<compile_context>
chip_gen: v5e
topology: v5e:2x2
jax: 0.10.0
libtpu: 0.0.40
codegen_flags: <defaults>
</compile_context>

<pallas_src>
import functools
import math

import jax
import jax.numpy as jnp
from jax import lax
from jax.experimental import pallas as pl
from jax.experimental.pallas import tpu as pltpu


def _round_up(v, m):
    return (v + m - 1) // m * m


def _pick_block(extent, cap, unit):
    """Largest block size <= cap (multiple of `unit`), preferring one that
    evenly divides `extent` (searched down to cap/2) so no ragged-tail masking
    is needed.  If the whole extent fits, the full extent is used (legal per
    the 'block dim == full array dim' rule)."""
    cap_u = max((cap // unit) * unit, unit)
    if extent <= cap_u:
        return extent
    lo = max((cap_u // 2 // unit) * unit, unit)
    t = cap_u
    while t >= lo:
        if extent % t == 0:
            return t
        t -= unit
    return cap_u


def _threhook_layer_kernel(m, k, tm, tk, with_output, *refs):
    """Fused ReLU + layer-level statistics over one (tm, tk) activation tile.

    Grid is (num_m_tiles, num_k_tiles); K is the reduction axis (innermost).

    refs (with_output=True) : x_ref, y_ref, stat_ref, max_acc, sum_acc, sq_acc
    refs (with_output=False): x_ref, stat_ref, max_acc, sum_acc, sq_acc

    x_ref    : (tm, tk) VMEM input tile of x
    y_ref    : (tm, tk) VMEM output tile, relu(x) (stored in the input dtype)
    stat_ref : (1, 8, 128) VMEM per-M-tile partial statistics written at the
               last K step:  sublane 0 = max(relu(x)), 1 = sum(x),
               2 = sum(x*x)  (every lane of a sublane carries the same value)
    *_acc    : (8, 128) f32 VMEM accumulators — every lane holds the same
               running scalar (broadcast accumulate, no full-tile scratch).
    """
    if with_output:
        x_ref, y_ref, stat_ref, max_acc, sum_acc, sq_acc = refs
    else:
        x_ref, stat_ref, max_acc, sum_acc, sq_acc = refs

    i = pl.program_id(0)
    j = pl.program_id(1)

    x = x_ref[...]
    y = jnp.maximum(x, 0)          # the wrapped nonlinearity (ReLU), fused
    if with_output:
        y_ref[...] = y             # store in the native dtype (halves bf16 traffic)

    xf = x.astype(jnp.float32)
    yf = y.astype(jnp.float32)

    # Ragged-tail masking.  m, k, tm, tk are static, so this code is emitted
    # ONLY for shapes whose tiles are actually partial (tile selection below
    # prefers divisor-friendly tm / tk, so this is the uncommon path).
    mask = None
    if m % tm != 0:
        rows = lax.broadcasted_iota(jnp.int32, (tm, tk), 0)
        mask = rows < (m - i * tm)
    if k % tk != 0:
        cols = lax.broadcasted_iota(jnp.int32, (tm, tk), 1)
        cmask = cols < (k - j * tk)
        mask = cmask if mask is None else (mask & cmask)
    if mask is not None:
        xf = jnp.where(mask, xf, 0.0)   # 0 is neutral for sum / sum-of-squares
        yf = jnp.where(mask, yf, 0.0)   # 0 is neutral for max of relu(x) >= 0
        # TODO(synk): the 0-mask is only a valid identity for max because the
        # wrapped nonlinearity is ReLU (>= 0); generalize if out_layer changes.

    @pl.when(j == 0)
    def _():
        max_acc[...] = jnp.zeros_like(max_acc)
        sum_acc[...] = jnp.zeros_like(sum_acc)
        sq_acc[...] = jnp.zeros_like(sq_acc)

    # Per-step full-tile reductions (VPU tree + one cheap XLU cross-lane
    # collapse); the scalar results are broadcast-accumulated into tiny vreg
    # accumulators.  No full-tile scratch -> no extra vld/vst per input vreg,
    # and ~3 blocks of VMEM freed (enables the larger tiles).
    max_acc[...] = jnp.maximum(max_acc[...], jnp.max(yf))
    sum_acc[...] = sum_acc[...] + jnp.sum(xf)
    sq_acc[...] = sq_acc[...] + jnp.sum(xf * xf)

    @pl.when(j == pl.num_programs(1) - 1)
    def _():
        mx = jnp.max(max_acc[...])   # all lanes hold the same running value
        sm = jnp.max(sum_acc[...])
        sq = jnp.max(sq_acc[...])
        row = lax.broadcasted_iota(jnp.int32, (1, 8, 128), 1)
        stat_ref[...] = jnp.where(row == 0, mx,
                        jnp.where(row == 1, sm,
                        jnp.where(row == 2, sq, 0.0)))


@functools.partial(jax.jit, static_argnames=("with_output", "block_elems"))
def threhook_layer_pallas(x, with_output=True, block_elems=1 << 20):
    """Fused ReLU + layer statistics.

    Returns (relu(x) or None, max(relu(x)), mean(x), var(x)) — layer level.
    with_output=False skips writing relu(x) back to HBM (stats-only path).
    """
    shape = x.shape
    if x.ndim == 4:
        n, c, h, w = shape
        m, k = n * c, h * w
    elif x.ndim >= 2:
        m, k = shape[0], math.prod(shape[1:])
    else:
        m, k = 1, int(shape[0])
    x2 = x.reshape(m, k)

    itemsize = jnp.dtype(x.dtype).itemsize
    sub = {4: 8, 2: 16, 1: 32}.get(itemsize, 8)   # dtype-native sublane packing

    # --- rows per block (tm) ------------------------------------------------
    rows_cap = max(256, min(_round_up(max(block_elems // max(k, 1), sub), sub), 1024))
    tm = _pick_block(m, rows_cap, sub)
    if m > sub and pl.cdiv(m, tm) < 2:
        # v7x megacore: give the "parallel" M axis at least two tiles so the
        # grid can shard across both TensorCores (harmless on v5e/v6e).
        tm = _pick_block(m, max(_round_up(pl.cdiv(m, 2), sub), sub), sub)
    nm = pl.cdiv(m, tm)

    # --- reduction-axis block (tk) -------------------------------------------
    cols_cap = max(512, _round_up(max(block_elems // max(tm, 1), 128), 128))
    tk = _pick_block(k, cols_cap, 128)
    nk = pl.cdiv(k, tk)

    kernel = functools.partial(_threhook_layer_kernel, m, k, tm, tk, with_output)

    stats_shape = jax.ShapeDtypeStruct((nm, 8, 128), jnp.float32)
    stats_spec = pl.BlockSpec((1, 8, 128), lambda i, j: (i, 0, 0))
    if with_output:
        out_shape = (jax.ShapeDtypeStruct((m, k), x.dtype), stats_shape)
        out_specs = (pl.BlockSpec((tm, tk), lambda i, j: (i, j)), stats_spec)
    else:
        out_shape = stats_shape
        out_specs = stats_spec

    outs = pl.pallas_call(
        kernel,
        out_shape=out_shape,
        grid=(nm, nk),
        in_specs=[pl.BlockSpec((tm, tk), lambda i, j: (i, j))],
        out_specs=out_specs,
        scratch_shapes=[pltpu.VMEM((8, 128), jnp.float32)] * 3,
        compiler_params=pltpu.CompilerParams(
            dimension_semantics=("parallel", "arbitrary"),
            vmem_limit_bytes=48 * 1024 * 1024,
        ),
    )(x2)

    if with_output:
        y2, stats = outs
    else:
        y2, stats = None, outs

    count = jnp.float32(m * k)
    max_relu = jnp.max(stats[:, 0, 0])
    mean = jnp.sum(stats[:, 1, 0]) / count
    # TODO(synk): E[x^2]-E[x]^2 can cancel for activations with large mean; a
    # Welford-style per-tile combine would be more robust (torch uses the same
    # layer-level statistics).  Clamp so the momentum blend never sees a
    # (numerically) negative variance.
    var = jnp.maximum(jnp.sum(stats[:, 2, 0]) / count - mean * mean, 0.0)
    y = y2.reshape(shape) if with_output else None
    return y, max_relu, mean, var


class ThreHook:
    """JAX port of ThreHook(mode, momentum, out_layer=nn.ReLU(), level='layer')."""

    def __init__(self, mode="Max", momentum=0.1, level="layer"):
        assert level == "layer", "only the default level='layer' is kernelized"
        self.mode = mode
        self.momentum = momentum
        self.level = level
        self.scale = None
        self.mean = None
        self.var = None
        self.num_batches_tracked = 0

    def __call__(self, x, need_output=True):
        keep_shape = (1,) * x.ndim
        batch = x.shape[0]
        mode = self.mode
        is_pct = mode[-1] == "%"
        # The ReLU output only has to be materialized when the caller consumes
        # it or when the percentile mode needs the full activation; Max / var
        # calibration can use the stats-only kernel (half the HBM traffic).
        want_y = bool(need_output or is_pct)
        y, max_relu, mean_t, var_t = threhook_layer_pallas(x, with_output=want_y)

        if mode.lower() == "var":
            mean_t = mean_t.reshape(keep_shape)
            var_t = var_t.reshape(keep_shape)
            if self.mean is None:
                self.mean = mean_t
                self.var = var_t
            else:
                delta = mean_t - self.mean
                self.momentum = batch / (self.num_batches_tracked + batch)
                self.mean = (1 - self.momentum) * self.mean + self.momentum * mean_t
                self.var = (1 - self.momentum) * self.var + self.momentum * (
                    var_t + (1 - self.momentum) * delta * delta
                )
            self.num_batches_tracked += batch
            return y

        if is_pct:
            pct = float(mode[:-1])
            if not 0 < pct < 100:
                raise ValueError(
                    f"Percentile value must be between 0 and 100, got {pct}"
                )
            # TODO(synk): torch.quantile needs a global selection; no clean
            # Pallas TPU equivalent, so the percentile is taken with
            # jnp.quantile on the kernel's fused ReLU output.  (An in-kernel
            # histogram would be faster but changes semantics.)
            s_t = jnp.quantile(y.reshape(-1), pct / 100.0).reshape(keep_shape)
        elif mode.lower() == "max":
            s_t = max_relu.reshape(keep_shape)
        else:
            # Matches the PyTorch module: any other mode string raises.
            raise NotImplementedError(
                "You have used a non-defined Method to get Threshold."
            )

        if self.scale is None:
            self.scale = s_t
        else:
            self.momentum = batch / (self.num_batches_tracked + batch)
            self.scale = (1 - self.momentum) * self.scale + self.momentum * s_t
        self.num_batches_tracked += batch
        return y


class ThresholdGetter:
    """Mirror of Threshold_Getter.forward: wrap the model's nonlinearity (ReLU)
    with a ThreHook and stream the calibration dataloader through it."""

    # NOTE: default mode '99.9' (no '%') mirrors the PyTorch module's default
    # and, exactly like torch, raises NotImplementedError inside the hook.
    def __init__(self, dataloader, mode="99.9", level="layer", momentum=0.1):
        self.dataloader = dataloader
        self.mode = mode
        self.level = level
        self.momentum = momentum

    def __call__(self):
        hook = ThreHook(mode=self.mode, momentum=self.momentum, level=self.level)
        for imgs, _ in self.dataloader:
            # "model_with_hook(imgs)" — the loop discards the hook output, so
            # the stats-only kernel path can skip the ReLU writeback.
            hook(imgs, need_output=False)
        return hook


Threshold_Getter = ThresholdGetter  # name alias matching the PyTorch module


# ----------------------------- reference (plain JAX) ------------------------


def _ref_run(batches, mode):
    scale = mean = var = None
    tracked = 0
    last_y = None
    for x, _ in batches:
        batch = x.shape[0]
        keep = (1,) * x.ndim
        y = jnp.maximum(x, 0.0)
        if mode.lower() == "var":
            mean_t = jnp.mean(x).reshape(keep)
            var_t = jnp.var(x).reshape(keep)
            if mean is None:
                mean, var = mean_t, var_t
            else:
                delta = mean_t - mean
                mm = batch / (tracked + batch)
                mean = (1 - mm) * mean + mm * mean_t
                var = (1 - mm) * var + mm * (var_t + (1 - mm) * delta * delta)
        else:
            if mode[-1] == "%":
                q = float(mode[:-1]) / 100.0
                s_t = jnp.quantile(y.reshape(-1), q).reshape(keep)
            else:
                s_t = jnp.max(y).reshape(keep)
            if scale is None:
                scale = s_t
            else:
                mm = batch / (tracked + batch)
                scale = (1 - mm) * scale + mm * s_t
        tracked += batch
        last_y = y
    return scale, mean, var, last_y


if __name__ == "__main__":
    key = jax.random.PRNGKey(0)
    batches = []
    for _ in range(3):
        key, sub = jax.random.split(key)
        batches.append((jax.random.normal(sub, (2, 4, 16, 16), jnp.float32), None))

    ok = True

    # --- direct kernel checks on a ragged shape ------------------------------
    key, sub = jax.random.split(key)
    x_odd = jax.random.normal(sub, (4, 70, 36, 40), jnp.float32)  # M=280, K=1440
    relu_o = jnp.maximum(x_odd, 0.0)

    # default tiling path (single K tile, split + masked M tiles)
    y_o, mx_o, mean_o, var_o = threhook_layer_pallas(x_odd)
    jax.block_until_ready(y_o)
    ok &= bool(jnp.allclose(y_o, relu_o, atol=1e-6))
    ok &= bool(jnp.allclose(mx_o, jnp.max(relu_o), atol=1e-6))
    ok &= bool(jnp.allclose(mean_o, jnp.mean(x_odd), atol=1e-5))
    ok &= bool(jnp.allclose(var_o, jnp.var(x_odd), rtol=1e-3, atol=1e-3))

    # forced small blocks: multi M-tile x multi K-tile, ragged rows AND cols,
    # exercises init / accumulate / finalize across the reduction axis.
    y_s, mx_s, mean_s, var_s = threhook_layer_pallas(x_odd, block_elems=32 * 1024)
    jax.block_until_ready(y_s)
    ok &= bool(jnp.allclose(y_s, relu_o, atol=1e-6))
    ok &= bool(jnp.allclose(mx_s, jnp.max(relu_o), atol=1e-6))
    ok &= bool(jnp.allclose(mean_s, jnp.mean(x_odd), atol=1e-5))
    ok &= bool(jnp.allclose(var_s, jnp.var(x_odd), rtol=1e-3, atol=1e-3))

    # --- bf16 / stats-only path (dtype sublane rounding, no ReLU writeback) --
    key, sub = jax.random.split(key)
    x_bf = jax.random.normal(sub, (2, 8, 24, 20), jnp.float32).astype(jnp.bfloat16)
    y_n, mx_b, mean_b, var_b = threhook_layer_pallas(x_bf, with_output=False)
    jax.block_until_ready(mx_b)
    xb32 = x_bf.astype(jnp.float32)
    ok &= y_n is None
    ok &= bool(jnp.allclose(mx_b, jnp.max(jnp.maximum(xb32, 0.0)), atol=1e-6))
    ok &= bool(jnp.allclose(mean_b, jnp.mean(xb32), atol=1e-4))
    ok &= bool(jnp.allclose(var_b, jnp.var(xb32), rtol=1e-3, atol=1e-3))

    # --- mode='Max' ----------------------------------------------------------
    hook_max = ThresholdGetter(batches, mode="Max")()
    y_last = hook_max(batches[-1][0])  # one extra call also checks the ReLU output
    jax.block_until_ready(y_last)
    ref_scale, _, _, ref_y = _ref_run(batches, "Max")
    ok &= bool(jnp.allclose(y_last, ref_y, atol=1e-6))
    ref4_scale, _, _, _ = _ref_run(batches + [batches[-1]], "Max")
    ok &= bool(jnp.allclose(hook_max.scale, ref4_scale, atol=1e-5))

    # --- mode='var' ----------------------------------------------------------
    hook_var = ThresholdGetter(batches, mode="var")()
    jax.block_until_ready(hook_var.mean)
    _, ref_mean, ref_var, _ = _ref_run(batches, "var")
    ok &= bool(jnp.allclose(hook_var.mean, ref_mean, atol=1e-5))
    ok &= bool(jnp.allclose(hook_var.var, ref_var, atol=1e-4))

    # --- percentile mode ('99.9%'; requires trailing '%' just like torch) ----
    hook_pct = ThresholdGetter(batches, mode="99.9%")()
    jax.block_until_ready(hook_pct.scale)
    ref_pct_scale, _, _, _ = _ref_run(batches, "99.9%")
    ok &= bool(jnp.allclose(hook_pct.scale, ref_pct_scale, atol=1e-5))

    if ok:
        print("KERNEL_OK")
    else:
        print("MISMATCH")
</pallas_src>

<mosaic_0001>
module attributes {stable_mosaic.version = 11 : i64} {
  func.func @_threhook_layer_kernel(%arg0: i32, %arg1: i32, %arg2: memref<144x1440xf32, #tpu.memory_space<vmem>>, %arg3: memref<144x1440xf32, #tpu.memory_space<vmem>>, %arg4: memref<1x8x128xf32, #tpu.memory_space<vmem>>, %arg5: memref<8x128xf32, #tpu.memory_space<vmem>>, %arg6: memref<8x128xf32, #tpu.memory_space<vmem>>, %arg7: memref<8x128xf32, #tpu.memory_space<vmem>>) attributes {dimension_semantics = [#tpu.dimension_semantics<parallel>, #tpu.dimension_semantics<arbitrary>], iteration_bounds = array<i64: 2, 1>, scalar_prefetch = 0 : i64, scratch_operands = 3 : i64, tpu.core_type = #tpu.core_type<tc>, window_params = [{transform_indices = @transform_0, window_bounds = array<i64: 144, 1440>}, {transform_indices = @transform_1, window_bounds = array<i64: 144, 1440>}, {transform_indices = @transform_2, window_bounds = array<i64: 1, 8, 128>}]} {
    %c0 = arith.constant 0 : index
    %c0_0 = arith.constant 0 : index
    %0 = vector.load %arg2[%c0, %c0_0] : memref<144x1440xf32, #tpu.memory_space<vmem>>, vector<144x1440xf32>
    %cst = arith.constant 0.000000e+00 : f32
    %1 = vector.broadcast %cst : f32 to vector<144x1440xf32>
    %2 = arith.maximumf %0, %1 : vector<144x1440xf32>
    %c0_1 = arith.constant 0 : index
    %c0_2 = arith.constant 0 : index
    %3 = vector.load %arg3[%c0_1, %c0_2] : memref<144x1440xf32, #tpu.memory_space<vmem>>, vector<144x1440xf32>
    tpu.vector_store %arg3[%c0_1, %c0_2], %2 {strides = array<i32>} : memref<144x1440xf32, #tpu.memory_space<vmem>>, vector<144x1440xf32>,
    %4 = tpu.iota {dimensions = array<i32: 0>} : vector<144x1440xi32>
    %c144_i32 = arith.constant 144 : i32
    %5 = arith.muli %arg0, %c144_i32 : i32
    %c280_i32 = arith.constant 280 : i32
    %6 = arith.subi %c280_i32, %5 : i32
    %7 = vector.broadcast %6 : i32 to vector<144x1440xi32>
    %8 = arith.cmpi slt, %4, %7 : vector<144x1440xi32>
    %cst_3 = arith.constant 0.000000e+00 : f32
    %9 = vector.broadcast %cst_3 : f32 to vector<144x1440xf32>
    %10 = arith.select %8, %0, %9 : vector<144x1440xi1>, vector<144x1440xf32>
    %cst_4 = arith.constant 0.000000e+00 : f32
    %11 = vector.broadcast %cst_4 : f32 to vector<144x1440xf32>
    %12 = arith.select %8, %2, %11 : vector<144x1440xi1>, vector<144x1440xf32>
    %c0_i32 = arith.constant 0 : i32
    %13 = arith.cmpi eq, %arg1, %c0_i32 : i32
    %14 = arith.extui %13 : i1 to i32
    %c0_i32_5 = arith.constant 0 : i32
    %15 = arith.cmpi ne, %14, %c0_i32_5 : i32
    scf.if %15 {
      %cst_23 = arith.constant 0.000000e+00 : f32
      %44 = vector.broadcast %cst_23 : f32 to vector<8x128xf32>
      %c0_24 = arith.constant 0 : index
      %c0_25 = arith.constant 0 : index
      %45 = vector.load %arg5[%c0_24, %c0_25] : memref<8x128xf32, #tpu.memory_space<vmem>>, vector<8x128xf32>
      tpu.vector_store %arg5[%c0_24, %c0_25], %44 {strides = array<i32>} : memref<8x128xf32, #tpu.memory_space<vmem>>, vector<8x128xf32>,
      %cst_26 = arith.constant 0.000000e+00 : f32
      %46 = vector.broadcast %cst_26 : f32 to vector<8x128xf32>
      %c0_27 = arith.constant 0 : index
      %c0_28 = arith.constant 0 : index
      %47 = vector.load %arg6[%c0_27, %c0_28] : memref<8x128xf32, #tpu.memory_space<vmem>>, vector<8x128xf32>
      tpu.vector_store %arg6[%c0_27, %c0_28], %46 {strides = array<i32>} : memref<8x128xf32, #tpu.memory_space<vmem>>, vector<8x128xf32>,
      %cst_29 = arith.constant 0.000000e+00 : f32
      %48 = vector.broadcast %cst_29 : f32 to vector<8x128xf32>
      %c0_30 = arith.constant 0 : index
      %c0_31 = arith.constant 0 : index
      %49 = vector.load %arg7[%c0_30, %c0_31] : memref<8x128xf32, #tpu.memory_space<vmem>>, vector<8x128xf32>
      tpu.vector_store %arg7[%c0_30, %c0_31], %48 {strides = array<i32>} : memref<8x128xf32, #tpu.memory_space<vmem>>, vector<8x128xf32>,
    } else {
    }
    %c0_6 = arith.constant 0 : index
    %c0_7 = arith.constant 0 : index
    %16 = vector.load %arg5[%c0_6, %c0_7] : memref<8x128xf32, #tpu.memory_space<vmem>>, vector<8x128xf32>
    %17 = vector.shape_cast %12 : vector<144x1440xf32> to vector<1x144x1440xf32>
    %cst_8 = arith.constant dense<0xFF800000> : vector<1xf32>
    %18 = vector.multi_reduction <maximumf>, %17, %cst_8 [1, 2] : vector<1x144x1440xf32> to vector<1xf32>
    %19 = vector.shape_cast %18 : vector<1xf32> to vector<1x1x1xf32>
    %20 = vector.extract %19[0, 0, 0] : f32 from vector<1x1x1xf32>
    %21 = vector.broadcast %20 : f32 to vector<8x128xf32>
    %22 = arith.maximumf %16, %21 : vector<8x128xf32>
    %c0_9 = arith.constant 0 : index
    %c0_10 = arith.constant 0 : index
    %23 = vector.load %arg5[%c0_9, %c0_10] : memref<8x128xf32, #tpu.memory_space<vmem>>, vector<8x128xf32>
    tpu.vector_store %arg5[%c0_9, %c0_10], %22 {strides = array<i32>} : memref<8x128xf32, #tpu.memory_space<vmem>>, vector<8x128xf32>,
    %c0_11 = arith.constant 0 : index
    %c0_12 = arith.constant 0 : index
    %24 = vector.load %arg6[%c0_11, %c0_12] : memref<8x128xf32, #tpu.memory_space<vmem>>, vector<8x128xf32>
    %25 = vector.shape_cast %10 : vector<144x1440xf32> to vector<1x144x1440xf32>
    %cst_13 = arith.constant dense<0.000000e+00> : vector<1xf32>
    %26 = vector.multi_reduction <add>, %25, %cst_13 [1, 2] : vector<1x144x1440xf32> to vector<1xf32>
    %27 = vector.shape_cast %26 : vector<1xf32> to vector<1x1x1xf32>
    %28 = vector.extract %27[0, 0, 0] : f32 from vector<1x1x1xf32>
    %29 = vector.broadcast %28 : f32 to vector<8x128xf32>
    %30 = arith.addf %24, %29 : vector<8x128xf32>
    %c0_14 = arith.constant 0 : index
    %c0_15 = arith.constant 0 : index
    %31 = vector.load %arg6[%c0_14, %c0_15] : memref<8x128xf32, #tpu.memory_space<vmem>>, vector<8x128xf32>
    tpu.vector_store %arg6[%c0_14, %c0_15], %30 {strides = array<i32>} : memref<8x128xf32, #tpu.memory_space<vmem>>, vector<8x128xf32>,
    %c0_16 = arith.constant 0 : index
    %c0_17 = arith.constant 0 : index
    %32 = vector.load %arg7[%c0_16, %c0_17] : memref<8x128xf32, #tpu.memory_space<vmem>>, vector<8x128xf32>
    %33 = arith.mulf %10, %10 : vector<144x1440xf32>
    %34 = vector.shape_cast %33 : vector<144x1440xf32> to vector<1x144x1440xf32>
    %cst_18 = arith.constant dense<0.000000e+00> : vector<1xf32>
    %35 = vector.multi_reduction <add>, %34, %cst_18 [1, 2] : vector<1x144x1440xf32> to vector<1xf32>
    %36 = vector.shape_cast %35 : vector<1xf32> to vector<1x1x1xf32>
    %37 = vector.extract %36[0, 0, 0] : f32 from vector<1x1x1xf32>
    %38 = vector.broadcast %37 : f32 to vector<8x128xf32>
    %39 = arith.addf %32, %38 : vector<8x128xf32>
    %c0_19 = arith.constant 0 : index
    %c0_20 = arith.constant 0 : index
    %40 = vector.load %arg7[%c0_19, %c0_20] : memref<8x128xf32, #tpu.memory_space<vmem>>, vector<8x128xf32>
    tpu.vector_store %arg7[%c0_19, %c0_20], %39 {strides = array<i32>} : memref<8x128xf32, #tpu.memory_space<vmem>>, vector<8x128xf32>,
    %c0_i32_21 = arith.constant 0 : i32
    %41 = arith.cmpi eq, %arg1, %c0_i32_21 : i32
    %42 = arith.extui %41 : i1 to i32
    %c0_i32_22 = arith.constant 0 : i32
    %43 = arith.cmpi ne, %42, %c0_i32_22 : i32
    scf.if %43 {
      %c0_23 = arith.constant 0 : index
      %c0_24 = arith.constant 0 : index
      %44 = vector.load %arg5[%c0_23, %c0_24] : memref<8x128xf32, #tpu.memory_space<vmem>>, vector<8x128xf32>
      %45 = vector.shape_cast %44 : vector<8x128xf32> to vector<1x8x128xf32>
      %cst_25 = arith.constant dense<0xFF800000> : vector<1xf32>
      %46 = vector.multi_reduction <maximumf>, %45, %cst_25 [1, 2] : vector<1x8x128xf32> to vector<1xf32>
      %47 = vector.shape_cast %46 : vector<1xf32> to vector<1x1x1xf32>
      %48 = vector.extract %47[0, 0, 0] : f32 from vector<1x1x1xf32>
      %c0_26 = arith.constant 0 : index
      %c0_27 = arith.constant 0 : index
      %49 = vector.load %arg6[%c0_26, %c0_27] : memref<8x128xf32, #tpu.memory_space<vmem>>, vector<8x128xf32>
      %50 = vector.shape_cast %49 : vector<8x128xf32> to vector<1x8x128xf32>
      %cst_28 = arith.constant dense<0xFF800000> : vector<1xf32>
      %51 = vector.multi_reduction <maximumf>, %50, %cst_28 [1, 2] : vector<1x8x128xf32> to vector<1xf32>
      %52 = vector.shape_cast %51 : vector<1xf32> to vector<1x1x1xf32>
      %53 = vector.extract %52[0, 0, 0] : f32 from vector<1x1x1xf32>
      %c0_29 = arith.constant 0 : index
      %c0_30 = arith.constant 0 : index
      %54 = vector.load %arg7[%c0_29, %c0_30] : memref<8x128xf32, #tpu.memory_space<vmem>>, vector<8x128xf32>
      %55 = vector.shape_cast %54 : vector<8x128xf32> to vector<1x8x128xf32>
      %cst_31 = arith.constant dense<0xFF800000> : vector<1xf32>
      %56 = vector.multi_reduction <maximumf>, %55, %cst_31 [1, 2] : vector<1x8x128xf32> to vector<1xf32>
      %57 = vector.shape_cast %56 : vector<1xf32> to vector<1x1x1xf32>
      %58 = vector.extract %57[0, 0, 0] : f32 from vector<1x1x1xf32>
      %59 = tpu.iota {dimensions = array<i32: 1>} : vector<1x8x128xi32>
      %c0_i32_32 = arith.constant 0 : i32
      %60 = vector.broadcast %c0_i32_32 : i32 to vector<1x8x128xi32>
      %61 = arith.cmpi eq, %59, %60 : vector<1x8x128xi32>
      %c1_i32 = arith.constant 1 : i32
      %62 = vector.broadcast %c1_i32 : i32 to vector<1x8x128xi32>
      %63 = arith.cmpi eq, %59, %62 : vector<1x8x128xi32>
      %c2_i32 = arith.constant 2 : i32
      %64 = vector.broadcast %c2_i32 : i32 to vector<1x8x128xi32>
      %65 = arith.cmpi eq, %59, %64 : vector<1x8x128xi32>
      %cst_33 = arith.constant 0.000000e+00 : f32
      %66 = vector.broadcast %58 : f32 to vector<1x8x128xf32>
      %67 = vector.broadcast %cst_33 : f32 to vector<1x8x128xf32>
      %68 = arith.select %65, %66, %67 : vector<1x8x128xi1>, vector<1x8x128xf32>
      %69 = vector.broadcast %53 : f32 to vector<1x8x128xf32>
      %70 = arith.select %63, %69, %68 : vector<1x8x128xi1>, vector<1x8x128xf32>
      %71 = vector.broadcast %48 : f32 to vector<1x8x128xf32>
      %72 = arith.select %61, %71, %70 : vector<1x8x128xi1>, vector<1x8x128xf32>
      %c0_34 = arith.constant 0 : index
      %c0_35 = arith.constant 0 : index
      %c0_36 = arith.constant 0 : index
      %73 = vector.load %arg4[%c0_34, %c0_35, %c0_36] : memref<1x8x128xf32, #tpu.memory_space<vmem>>, vector<1x8x128xf32>
      tpu.vector_store %arg4[%c0_34, %c0_35, %c0_36], %72 {strides = array<i32>} : memref<1x8x128xf32, #tpu.memory_space<vmem>>, vector<1x8x128xf32>,
    } else {
    }
    return
  }
  func.func @transform_0(%arg0: i32, %arg1: i32) -> (i32, i32) {
    %c0_i32 = arith.constant 0 : i32
    return %arg0, %arg1 : i32, i32
  }
  func.func @transform_1(%arg0: i32, %arg1: i32) -> (i32, i32) {
    %c0_i32 = arith.constant 0 : i32
    return %arg0, %arg1 : i32, i32
  }
  func.func @transform_2(%arg0: i32, %arg1: i32) -> (i32, i32, i32) {
    %c0_i32 = arith.constant 0 : i32
    %c0_i32_0 = arith.constant 0 : i32
    %c0_i32_1 = arith.constant 0 : i32
    return %arg0, %c0_i32, %c0_i32_0 : i32, i32, i32
  }
}

</mosaic_0001>

<llo_original>
// kernel: threhook_layer_pallas.1
$region0: #{threhook_layer_pallas.1}
  #allocation0 [shape = 'u32[]', space=smem, size = 0x4, offset = 0x4, fixed_abs, tag = 'smem constant byte address 0x4 - core index']
  #allocation1 [shape = 'u32[72,128]{1,0:T(1,128)}', space=vmem, size = 0x9000, scoped, tag = 'internal scratch']
  #allocation2 [shape = 'f32[8,128]{1,0:T(8,128)}', space=vmem, size = 0x1000, scoped, tag = 'scratch operand']
  #allocation3 [shape = 'f32[8,128]{1,0:T(8,128)}', space=vmem, size = 0x1000, scoped, tag = 'scratch operand']
  #allocation4 [shape = 'f32[8,128]{1,0:T(8,128)}', space=vmem, size = 0x1000, scoped, tag = 'scratch operand']
  %s0 = inlined_call_operand.vmem [shape: f32[280,1440], index: 0, kind: input, shape index: {}]
  %s1 = inlined_call_operand.vmem [shape: f32[280,1440], index: 1, kind: output, shape index: {0}]
  %s2 = inlined_call_operand.vmem [shape: f32[2,8,128], index: 2, kind: output, shape index: {1}]
  %3 = xla_tuple %s1, %s2
  %s4 = sld [smem:[#allocation0]]
  $region79: #{threhook_layer_pallas.1} parent=0
    _
  %s6 = ssub.s32 1, %s4
  %s7 = scalar_select 0, %s6, %s4
  $region1: #{threhook_layer_pallas.1} parent=0
    #allocation5 [shape = 'u8[1769472]{0}', space=vmem, size = 0x1b0000, scoped, tag = 'output window, operand 0']
    loop: start=0, step=1, limit=4
    $region2: #{threhook_layer_pallas.1} parent=1 // loop_pre_header
      _
    $region3: #{threhook_layer_pallas.1} parent=1 // loop_header
      %s9 = sphi 0, %s13
      %p10 = scmp.ge.s32.totalorder %s9, 4
      %s16 = sphi 0, %s28
      %s17 = sphi 0, %s24
      %s18 = sphi 0, %s16
      %s19 = sphi 0, %s17
      %s20 = sphi 0, %s18
      %s21 = sphi 0, %s19
      %s33 = sphi 0, %s35
      %s36 = sphi 0, %s33
      %s37 = sphi 0, %s36
      %s53 = sphi 0, %s37
      %s61 = sphi 0, %s63
      %s64 = sphi 0, %s61
      %s65 = sphi 0, %s64
      %s81 = sphi 0, %s65
      %s87 = sphi 0, %s89
      %s90 = sphi 0, %s87
      %s91 = sphi 0, %s90
      %s107 = sphi 0, %s91
    $region4: #{threhook_layer_pallas.1} parent=1 // loop_header_branch
      %12 = sbr.rel (%p10) target = $region8
    $region5: #{threhook_layer_pallas.1} parent=1 // loop_body
      %s14 = ssub.s32 %s9, 1
      %s15 = ssub.s32 %s9, 2
      %s22 = sadd.s32 1, %s17
      %p23 = scmp.ge.s32.totalorder %s22, 1
      %s24 = scalar_select %p23, 0, %s22
      %s25 = sadd.s32 1, %s16
      %s26 = scalar_select %p23, %s25, %s16
      %p27 = scmp.ge.s32.totalorder %s26, 2
      %s28 = scalar_select %p27, 0, %s26
      %s29 = ssub.s32 %s16, %s28
      %s30 = ssub.s32 %s17, %s24
      %s31 = sor.u32 %s29, %s30
      %p32 = scmp.eq.s32.totalorder %s31, 0
      %s34 = sadd.s32 %s33, 1
      %s35 = scalar_select %p32, %s33, %s34
      %p38 = pneg %p32
      %p39 = scmp.eq.s32.totalorder %s9, 1
      %p40 = por %p38, %p39
      %p41 = scmp.ne.s32.totalorder %s33, %s36
      %p42 = scmp.eq.s32.totalorder %s9, 0
      %p43 = por %p41, %p42
      %p44 = scmp.ne.s32.totalorder %s33, %s36
      %p45 = scmp.eq.s32.totalorder %s14, 1
      %p46 = por %p44, %p45
      %p47 = scmp.ne.s32.totalorder %s36, %s37
      %p48 = scmp.eq.s32.totalorder %s14, 0
      %p49 = por %p47, %p48
      %p50 = scmp.ne.s32.totalorder %s36, %s37
      %p51 = scmp.eq.s32.totalorder %s15, 1
      %p52 = por %p50, %p51
      %p54 = scmp.ne.s32.totalorder %s37, %s53
      %p55 = scmp.eq.s32.totalorder %s15, 0
      %p56 = por %p54, %p55
      %s57 = ssub.s32 %s16, %s28
      %s58 = ssub.s32 %s17, %s24
      %s59 = sor.u32 %s57, %s58
      %p60 = scmp.eq.s32.totalorder %s59, 0
      %s62 = sadd.s32 %s61, 1
      %s63 = scalar_select %p60, %s61, %s62
      %p66 = pneg %p60
      %p67 = scmp.eq.s32.totalorder %s9, 1
      %p68 = por %p66, %p67
      %p69 = scmp.ne.s32.totalorder %s61, %s64
      %p70 = scmp.eq.s32.totalorder %s9, 0
      %p71 = por %p69, %p70
      %p72 = scmp.ne.s32.totalorder %s61, %s64
      %p73 = scmp.eq.s32.totalorder %s14, 1
      %p74 = por %p72, %p73
      %p75 = scmp.ne.s32.totalorder %s64, %s65
      %p76 = scmp.eq.s32.totalorder %s14, 0
      %p77 = por %p75, %p76
      %p78 = scmp.ne.s32.totalorder %s64, %s65
      %p79 = scmp.eq.s32.totalorder %s15, 1
      %p80 = por %p78, %p79
      %p82 = scmp.ne.s32.totalorder %s65, %s81
      %p83 = scmp.eq.s32.totalorder %s15, 0
      %p84 = por %p82, %p83
      %s85 = ssub.s32 %s16, %s28
      %p86 = scmp.eq.s32.totalorder %s85, 0
      %s88 = sadd.s32 %s87, 1
      %s89 = scalar_select %p86, %s87, %s88
      %p92 = pneg %p86
      %p93 = scmp.eq.s32.totalorder %s9, 1
      %p94 = por %p92, %p93
      %p95 = scmp.ne.s32.totalorder %s87, %s90
      %p96 = scmp.eq.s32.totalorder %s9, 0
      %p97 = por %p95, %p96
      %p98 = scmp.ne.s32.totalorder %s87, %s90
      %p99 = scmp.eq.s32.totalorder %s14, 1
      %p100 = por %p98, %p99
      %p101 = scmp.ne.s32.totalorder %s90, %s91
      %p102 = scmp.eq.s32.totalorder %s14, 0
      %p103 = por %p101, %p102
      %p104 = scmp.ne.s32.totalorder %s90, %s91
      %p105 = scmp.eq.s32.totalorder %s15, 1
      %p106 = por %p104, %p105
      %p108 = scmp.ne.s32.totalorder %s91, %s107
      %p109 = scmp.eq.s32.totalorder %s15, 0
      %p110 = por %p108, %p109
      %p111 = scmp.le.s32.totalorder 1, %s9
      %p112 = scmp.lt.s32.totalorder %s9, 3
      %p113 = pnand %p111, %p112
      %p114 = pneg %p113
      // Predicated region
      $region9: #{threhook_layer_pallas.1} parent=5 // pred_check
        _
      $region10: #{threhook_layer_pallas.1} parent=5 // pred_check_branch
        %116 = sbr.rel (%p113) target = $region12
      $region11: #{threhook_layer_pallas.1} parent=5 // pred_region
        %s117 = ssub.s32 %s9, 1
      $region12: #{threhook_layer_pallas.1} parent=5 // pred_fallthru
        _
      %p118 = scmp.lt.s32.totalorder %s9, 2
      // Predicated region
      $region13: #{threhook_layer_pallas.1} parent=5 // pred_check
        %p119 = pneg %p118
      $region14: #{threhook_layer_pallas.1} parent=5 // pred_check_branch
        %121 = sbr.rel (%p119) target = $region16
      $region15: #{threhook_layer_pallas.1} parent=5 // pred_region
        // Predicated region
        $region17: #{threhook_layer_pallas.1} parent=15 // pred_check
          %p122 = pneg %p43
        $region18: #{threhook_layer_pallas.1} parent=15 // pred_check_branch
          %124 = sbr.rel (%p122) target = $region20
        $region19: #{threhook_layer_pallas.1} parent=15 // pred_region
          %s125 = smul.u32 18, %s16
          %s126 = smul.u32 12, %s17
          %s127 = ssub.s32 35, %s125
          %p128 = scmp.lt.s32.totalorder %s127, 18
          %s129 = scalar_select %p128, %s127, 18
          %s130 = smul.u32 8, %s129
          %s131 = smul.u32 %s130, 12
          %p132 = scmp.lt.s32.totalorder %s125, 34
          %s133 = scalar_select %p132, %s125, 34
          %p134 = scmp.lt.s32.totalorder %s126, 11
          %s135 = scalar_select %p134, %s126, 11
          %s136 = smul.addr %s133, 12
          %s137 = sadd.s32 %s135, %s136
          %s138 = smul.addr %s137, 8
          %s139 = scalar_lea.vmem %s0, %s138
          %s140 = smul.u32 18, %s16
          %s141 = smul.u32 12, %s17
          %s142 = ssub.s32 35, %s140
          %p143 = scmp.lt.s32.totalorder %s142, 18
          %s144 = scalar_select %p143, %s142, 18
          %s145 = smul.u32 8, %s144
          %s146 = smul.u32 %s145, 12
        $region20: #{threhook_layer_pallas.1} parent=15 // pred_fallthru
          _
      $region16: #{threhook_layer_pallas.1} parent=5 // pred_fallthru
        _
      %p147 = scmp.le.s32.totalorder 1, %s9
      %p148 = scmp.lt.s32.totalorder %s9, 3
      %p149 = pnand %p147, %p148
      %p150 = pneg %p149
      // Predicated region
      $region21: #{threhook_layer_pallas.1} parent=5 // pred_check
        _
      $region22: #{threhook_layer_pallas.1} parent=5 // pred_check_branch
        %152 = sbr.rel (%p149) target = $region24
      $region23: #{threhook_layer_pallas.1} parent=5 // pred_region
        %s153 = ssub.s32 %s9, 1
        %s154 = smul.u32 18, %s18
        %s155 = smul.u32 12, %s19
        %s156 = ssub.s32 35, %s154
        %p157 = scmp.lt.s32.totalorder %s156, 18
        %s158 = scalar_select %p157, %s156, 18
        %s159 = smul.u32 8, %s158
        %s160 = smul.u32 %s159, 12
        %p161 = scmp.lt.s32.totalorder %s154, 34
        %s162 = scalar_select %p161, %s154, 34
        %p163 = scmp.lt.s32.totalorder %s155, 11
        %s164 = scalar_select %p163, %s155, 11
        %s165 = smul.addr %s162, 12
        %s166 = sadd.s32 %s164, %s165
        %s167 = smul.addr %s166, 8
        %s168 = scalar_lea.vmem %s0, %s167
        %p169 = pneg %p49
        %p170 = pneg %p46
        %p171 = pneg %p77
        %p172 = pneg %p74
        %s173 = sand.u32 %s64, 1
        %s174 = sand.u32 %s64, 1
        %s175 = smul.addr %s174, 1728
        %s176 = scalar_lea.vmem [#allocation5], %s175
        %p177 = pneg %p103
        %p178 = pneg %p100
        %p179 = scmp.lt.s32.totalorder %s18, 1
        %s180 = scalar_select %p179, %s18, 1
        %s181 = smul.addr %s180, 8
        %s182 = scalar_lea.vmem %s2, %s181
        %s183 = smul.u32 18, %s18
        %s184 = smul.u32 12, %s19
        %s185 = ssub.s32 35, %s183
        %p186 = scmp.lt.s32.totalorder %s185, 18
        %s187 = scalar_select %p186, %s185, 18
        %s188 = smul.u32 8, %s187
        %s189 = smul.u32 %s188, 12
        %p190 = scmp.lt.s32.totalorder %s183, 34
        %s191 = scalar_select %p190, %s183, 34
        %p192 = scmp.lt.s32.totalorder %s184, 11
        %s193 = scalar_select %p192, %s184, 11
        %s194 = smul.addr %s191, 12
        %s195 = sadd.s32 %s193, %s194
        %s196 = smul.addr %s195, 8
        %s197 = scalar_lea.vmem %s0, %s196
        %s198 = smul.u32 18, %s18
        %s199 = smul.u32 12, %s19
        %s200 = ssub.s32 35, %s198
        %p201 = scmp.lt.s32.totalorder %s200, 18
        %s202 = scalar_select %p201, %s200, 18
        %s203 = smul.u32 8, %s202
        %s204 = smul.u32 %s203, 12
        %s205 = smul.u32 18, %s18
        %s206 = smul.u32 12, %s19
        %s207 = ssub.s32 35, %s205
        %p208 = scmp.lt.s32.totalorder %s207, 18
        %s209 = scalar_select %p208, %s207, 18
        %s210 = smul.u32 8, %s209
        %s211 = smul.u32 %s210, 12
        %p212 = scmp.lt.s32.totalorder %s18, 1
        %s213 = scalar_select %p212, %s18, 1
        %s214 = smul.addr %s213, 8
        %s215 = scalar_lea.vmem %s2, %s214
        %v216 = vld [vmem:[%s197] sm:$0xff]
        %v217 = vld [vmem:[%s197 + $0x8] sm:$0xff]
        %v218 = vld [vmem:[%s197 + $0x10] sm:$0xff]
        %v219 = vld [vmem:[%s197 + $0x18] sm:$0xff]
        %v220 = vld [vmem:[%s197 + $0x20] sm:$0xff]
        %v221 = vld [vmem:[%s197 + $0x28] sm:$0xff]
        %v222 = vld [vmem:[%s197 + $0x30] sm:$0xff]
        %v223 = vld [vmem:[%s197 + $0x38] sm:$0xff]
        %v224 = vld [vmem:[%s197 + $0x40] sm:$0xff]
        %v225 = vld [vmem:[%s197 + $0x48] sm:$0xff]
        %v226 = vld [vmem:[%s197 + $0x50] sm:$0xff]
        %v227 = vld [vmem:[%s197 + $0x58] sm:$0xff]
        %v228 = vld [vmem:[%s197 + $0x60] sm:$0xff]
        %v229 = vld [vmem:[%s197 + $0x68] sm:$0xff]
        %v230 = vld [vmem:[%s197 + $0x70] sm:$0xff]
        %v231 = vld [vmem:[%s197 + $0x78] sm:$0xff]
        %v232 = vld [vmem:[%s197 + $0x80] sm:$0xff]
        %v233 = vld [vmem:[%s197 + $0x88] sm:$0xff]
        %v234 = vld [vmem:[%s197 + $0x90] sm:$0xff]
        %v235 = vld [vmem:[%s197 + $0x98] sm:$0xff]
        %v236 = vld [vmem:[%s197 + $0xa0] sm:$0xff]
        %v237 = vld [vmem:[%s197 + $0xa8] sm:$0xff]
        %v238 = vld [vmem:[%s197 + $0xb0] sm:$0xff]
        %v239 = vld [vmem:[%s197 + $0xb8] sm:$0xff]
        %v240 = vld [vmem:[%s197 + $0xc0] sm:$0xff]
        %v241 = vld [vmem:[%s197 + $0xc8] sm:$0xff]
        %v242 = vld [vmem:[%s197 + $0xd0] sm:$0xff]
        %v243 = vld [vmem:[%s197 + $0xd8] sm:$0xff]
        %v244 = vld [vmem:[%s197 + $0xe0] sm:$0xff]
        %v245 = vld [vmem:[%s197 + $0xe8] sm:$0xff]
        %v246 = vld [vmem:[%s197 + $0xf0] sm:$0xff]
        %v247 = vld [vmem:[%s197 + $0xf8] sm:$0xff]
        %v248 = vld [vmem:[%s197 + $0x100] sm:$0xff]
        %v249 = vld [vmem:[%s197 + $0x108] sm:$0xff]
        %v250 = vld [vmem:[%s197 + $0x110] sm:$0xff]
        %v251 = vld [vmem:[%s197 + $0x118] sm:$0xff]
        %v252 = vld [vmem:[%s197 + $0x120] sm:$0xff]
        %v253 = vld [vmem:[%s197 + $0x128] sm:$0xff]
        %v254 = vld [vmem:[%s197 + $0x130] sm:$0xff]
        %v255 = vld [vmem:[%s197 + $0x138] sm:$0xff]
        %v256 = vld [vmem:[%s197 + $0x140] sm:$0xff]
        %v257 = vld [vmem:[%s197 + $0x148] sm:$0xff]
        %v258 = vld [vmem:[%s197 + $0x150] sm:$0xff]
        %v259 = vld [vmem:[%s197 + $0x158] sm:$0xff]
        %v260 = vld [vmem:[%s197 + $0x160] sm:$0xff]
        %v261 = vld [vmem:[%s197 + $0x168] sm:$0xff]
        %v262 = vld [vmem:[%s197 + $0x170] sm:$0xff]
        %v263 = vld [vmem:[%s197 + $0x178] sm:$0xff]
        %v264 = vld [vmem:[%s197 + $0x180] sm:$0xff]
        %v265 = vld [vmem:[%s197 + $0x188] sm:$0xff]
        %v266 = vld [vmem:[%s197 + $0x190] sm:$0xff]
        %v267 = vld [vmem:[%s197 + $0x198] sm:$0xff]
        %v268 = vld [vmem:[%s197 + $0x1a0] sm:$0xff]
        %v269 = vld [vmem:[%s197 + $0x1a8] sm:$0xff]
        %v270 = vld [vmem:[%s197 + $0x1b0] sm:$0xff]
        %v271 = vld [vmem:[%s197 + $0x1b8] sm:$0xff]
        %v272 = vld [vmem:[%s197 + $0x1c0] sm:$0xff]
        %v273 = vld [vmem:[%s197 + $0x1c8] sm:$0xff]
        %v274 = vld [vmem:[%s197 + $0x1d0] sm:$0xff]
        %v275 = vld [vmem:[%s197 + $0x1d8] sm:$0xff]
        %v276 = vld [vmem:[%s197 + $0x1e0] sm:$0xff]
        %v277 = vld [vmem:[%s197 + $0x1e8] sm:$0xff]
        %v278 = vld [vmem:[%s197 + $0x1f0] sm:$0xff]
        %v279 = vld [vmem:[%s197 + $0x1f8] sm:$0xff]
        %v280 = vld [vmem:[%s197 + $0x200] sm:$0xff]
        %v281 = vld [vmem:[%s197 + $0x208] sm:$0xff]
        %v282 = vld [vmem:[%s197 + $0x210] sm:$0xff]
        %v283 = vld [vmem:[%s197 + $0x218] sm:$0xff]
        %v284 = vld [vmem:[%s197 + $0x220] sm:$0xff]
        %v285 = vld [vmem:[%s197 + $0x228] sm:$0xff]
        %v286 = vld [vmem:[%s197 + $0x230] sm:$0xff]
        %v287 = vld [vmem:[%s197 + $0x238] sm:$0xff]
        %v288 = vld [vmem:[%s197 + $0x240] sm:$0xff]
        %v289 = vld [vmem:[%s197 + $0x248] sm:$0xff]
        %v290 = vld [vmem:[%s197 + $0x250] sm:$0xff]
        %v291 = vld [vmem:[%s197 + $0x258] sm:$0xff]
        %v292 = vld [vmem:[%s197 + $0x260] sm:$0xff]
        %v293 = vld [vmem:[%s197 + $0x268] sm:$0xff]
        %v294 = vld [vmem:[%s197 + $0x270] sm:$0xff]
        %v295 = vld [vmem:[%s197 + $0x278] sm:$0xff]
        %v296 = vld [vmem:[%s197 + $0x280] sm:$0xff]
        %v297 = vld [vmem:[%s197 + $0x288] sm:$0xff]
        %v298 = vld [vmem:[%s197 + $0x290] sm:$0xff]
        %v299 = vld [vmem:[%s197 + $0x298] sm:$0xff]
        %v300 = vld [vmem:[%s197 + $0x2a0] sm:$0xff]
        %v301 = vld [vmem:[%s197 + $0x2a8] sm:$0xff]
        %v302 = vld [vmem:[%s197 + $0x2b0] sm:$0xff]
        %v303 = vld [vmem:[%s197 + $0x2b8] sm:$0xff]
        %v304 = vld [vmem:[%s197 + $0x2c0] sm:$0xff]
        %v305 = vld [vmem:[%s197 + $0x2c8] sm:$0xff]
        %v306 = vld [vmem:[%s197 + $0x2d0] sm:$0xff]
        %v307 = vld [vmem:[%s197 + $0x2d8] sm:$0xff]
        %v308 = vld [vmem:[%s197 + $0x2e0] sm:$0xff]
        %v309 = vld [vmem:[%s197 + $0x2e8] sm:$0xff]
        %v310 = vld [vmem:[%s197 + $0x2f0] sm:$0xff]
        %v311 = vld [vmem:[%s197 + $0x2f8] sm:$0xff]
        %v312 = vld [vmem:[%s197 + $0x300] sm:$0xff]
        %v313 = vld [vmem:[%s197 + $0x308] sm:$0xff]
        %v314 = vld [vmem:[%s197 + $0x310] sm:$0xff]
        %v315 = vld [vmem:[%s197 + $0x318] sm:$0xff]
        %v316 = vld [vmem:[%s197 + $0x320] sm:$0xff]
        %v317 = vld [vmem:[%s197 + $0x328] sm:$0xff]
        %v318 = vld [vmem:[%s197 + $0x330] sm:$0xff]
        %v319 = vld [vmem:[%s197 + $0x338] sm:$0xff]
        %v320 = vld [vmem:[%s197 + $0x340] sm:$0xff]
        %v321 = vld [vmem:[%s197 + $0x348] sm:$0xff]
        %v322 = vld [vmem:[%s197 + $0x350] sm:$0xff]
        %v323 = vld [vmem:[%s197 + $0x358] sm:$0xff]
        %v324 = vld [vmem:[%s197 + $0x360] sm:$0xff]
        %v325 = vld [vmem:[%s197 + $0x368] sm:$0xff]
        %v326 = vld [vmem:[%s197 + $0x370] sm:$0xff]
        %v327 = vld [vmem:[%s197 + $0x378] sm:$0xff]
        %v328 = vld [vmem:[%s197 + $0x380] sm:$0xff]
        %v329 = vld [vmem:[%s197 + $0x388] sm:$0xff]
        %v330 = vld [vmem:[%s197 + $0x390] sm:$0xff]
        %v331 = vld [vmem:[%s197 + $0x398] sm:$0xff]
        %v332 = vld [vmem:[%s197 + $0x3a0] sm:$0xff]
        %v333 = vld [vmem:[%s197 + $0x3a8] sm:$0xff]
        %v334 = vld [vmem:[%s197 + $0x3b0] sm:$0xff]
        %v335 = vld [vmem:[%s197 + $0x3b8] sm:$0xff]
        %v336 = vld [vmem:[%s197 + $0x3c0] sm:$0xff]
        %v337 = vld [vmem:[%s197 + $0x3c8] sm:$0xff]
        %v338 = vld [vmem:[%s197 + $0x3d0] sm:$0xff]
        %v339 = vld [vmem:[%s197 + $0x3d8] sm:$0xff]
        %v340 = vld [vmem:[%s197 + $0x3e0] sm:$0xff]
        %v341 = vld [vmem:[%s197 + $0x3e8] sm:$0xff]
        %v342 = vld [vmem:[%s197 + $0x3f0] sm:$0xff]
        %v343 = vld [vmem:[%s197 + $0x3f8] sm:$0xff]
        %v344 = vld [vmem:[%s197 + $0x400] sm:$0xff]
        %v345 = vld [vmem:[%s197 + $0x408] sm:$0xff]
        %v346 = vld [vmem:[%s197 + $0x410] sm:$0xff]
        %v347 = vld [vmem:[%s197 + $0x418] sm:$0xff]
        %v348 = vld [vmem:[%s197 + $0x420] sm:$0xff]
        %v349 = vld [vmem:[%s197 + $0x428] sm:$0xff]
        %v350 = vld [vmem:[%s197 + $0x430] sm:$0xff]
        %v351 = vld [vmem:[%s197 + $0x438] sm:$0xff]
        %v352 = vld [vmem:[%s197 + $0x440] sm:$0xff]
        %v353 = vld [vmem:[%s197 + $0x448] sm:$0xff]
        %v354 = vld [vmem:[%s197 + $0x450] sm:$0xff]
        %v355 = vld [vmem:[%s197 + $0x458] sm:$0xff]
        %v356 = vld [vmem:[%s197 + $0x460] sm:$0xff]
        %v357 = vld [vmem:[%s197 + $0x468] sm:$0xff]
        %v358 = vld [vmem:[%s197 + $0x470] sm:$0xff]
        %v359 = vld [vmem:[%s197 + $0x478] sm:$0xff]
        %v360 = vld [vmem:[%s197 + $0x480] sm:$0xff]
        %v361 = vld [vmem:[%s197 + $0x488] sm:$0xff]
        %v362 = vld [vmem:[%s197 + $0x490] sm:$0xff]
        %v363 = vld [vmem:[%s197 + $0x498] sm:$0xff]
        %v364 = vld [vmem:[%s197 + $0x4a0] sm:$0xff]
        %v365 = vld [vmem:[%s197 + $0x4a8] sm:$0xff]
        %v366 = vld [vmem:[%s197 + $0x4b0] sm:$0xff]
        %v367 = vld [vmem:[%s197 + $0x4b8] sm:$0xff]
        %v368 = vld [vmem:[%s197 + $0x4c0] sm:$0xff]
        %v369 = vld [vmem:[%s197 + $0x4c8] sm:$0xff]
        %v370 = vld [vmem:[%s197 + $0x4d0] sm:$0xff]
        %v371 = vld [vmem:[%s197 + $0x4d8] sm:$0xff]
        %v372 = vld [vmem:[%s197 + $0x4e0] sm:$0xff]
        %v373 = vld [vmem:[%s197 + $0x4e8] sm:$0xff]
        %v374 = vld [vmem:[%s197 + $0x4f0] sm:$0xff]
        %v375 = vld [vmem:[%s197 + $0x4f8] sm:$0xff]
        %v376 = vld [vmem:[%s197 + $0x500] sm:$0xff]
        %v377 = vld [vmem:[%s197 + $0x508] sm:$0xff]
        %v378 = vld [vmem:[%s197 + $0x510] sm:$0xff]
        %v379 = vld [vmem:[%s197 + $0x518] sm:$0xff]
        %v380 = vld [vmem:[%s197 + $0x520] sm:$0xff]
        %v381 = vld [vmem:[%s197 + $0x528] sm:$0xff]
        %v382 = vld [vmem:[%s197 + $0x530] sm:$0xff]
        %v383 = vld [vmem:[%s197 + $0x538] sm:$0xff]
        %v384 = vld [vmem:[%s197 + $0x540] sm:$0xff]
        %v385 = vld [vmem:[%s197 + $0x548] sm:$0xff]
        %v386 = vld [vmem:[%s197 + $0x550] sm:$0xff]
        %v387 = vld [vmem:[%s197 + $0x558] sm:$0xff]
        %v388 = vld [vmem:[%s197 + $0x560] sm:$0xff]
        %v389 = vld [vmem:[%s197 + $0x568] sm:$0xff]
        %v390 = vld [vmem:[%s197 + $0x570] sm:$0xff]
        %v391 = vld [vmem:[%s197 + $0x578] sm:$0xff]
        %v392 = vld [vmem:[%s197 + $0x580] sm:$0xff]
        %v393 = vld [vmem:[%s197 + $0x588] sm:$0xff]
        %v394 = vld [vmem:[%s197 + $0x590] sm:$0xff]
        %v395 = vld [vmem:[%s197 + $0x598] sm:$0xff]
        %v396 = vld [vmem:[%s197 + $0x5a0] sm:$0xff]
        %v397 = vld [vmem:[%s197 + $0x5a8] sm:$0xff]
        %v398 = vld [vmem:[%s197 + $0x5b0] sm:$0xff]
        %v399 = vld [vmem:[%s197 + $0x5b8] sm:$0xff]
        %v400 = vld [vmem:[%s197 + $0x5c0] sm:$0xff]
        %v401 = vld [vmem:[%s197 + $0x5c8] sm:$0xff]
        %v402 = vld [vmem:[%s197 + $0x5d0] sm:$0xff]
        %v403 = vld [vmem:[%s197 + $0x5d8] sm:$0xff]
        %v404 = vld [vmem:[%s197 + $0x5e0] sm:$0xff]
        %v405 = vld [vmem:[%s197 + $0x5e8] sm:$0xff]
        %v406 = vld [vmem:[%s197 + $0x5f0] sm:$0xff]
        %v407 = vld [vmem:[%s197 + $0x5f8] sm:$0xff]
        %v408 = vld [vmem:[%s197 + $0x600] sm:$0xff]
        %v409 = vld [vmem:[%s197 + $0x608] sm:$0xff]
        %v410 = vld [vmem:[%s197 + $0x610] sm:$0xff]
        %v411 = vld [vmem:[%s197 + $0x618] sm:$0xff]
        %v412 = vld [vmem:[%s197 + $0x620] sm:$0xff]
        %v413 = vld [vmem:[%s197 + $0x628] sm:$0xff]
        %v414 = vld [vmem:[%s197 + $0x630] sm:$0xff]
        %v415 = vld [vmem:[%s197 + $0x638] sm:$0xff]
        %v416 = vld [vmem:[%s197 + $0x640] sm:$0xff]
        %v417 = vld [vmem:[%s197 + $0x648] sm:$0xff]
        %v418 = vld [vmem:[%s197 + $0x650] sm:$0xff]
        %v419 = vld [vmem:[%s197 + $0x658] sm:$0xff]
        %v420 = vld [vmem:[%s197 + $0x660] sm:$0xff]
        %v421 = vld [vmem:[%s197 + $0x668] sm:$0xff]
        %v422 = vld [vmem:[%s197 + $0x670] sm:$0xff]
        %v423 = vld [vmem:[%s197 + $0x678] sm:$0xff]
        %v424 = vld [vmem:[%s197 + $0x680] sm:$0xff]
        %v425 = vld [vmem:[%s197 + $0x688] sm:$0xff]
        %v426 = vld [vmem:[%s197 + $0x690] sm:$0xff]
        %v427 = vld [vmem:[%s197 + $0x698] sm:$0xff]
        %v428 = vld [vmem:[%s197 + $0x6a0] sm:$0xff]
        %v429 = vld [vmem:[%s197 + $0x6a8] sm:$0xff]
        %v430 = vld [vmem:[%s197 + $0x6b0] sm:$0xff]
        %v431 = vld [vmem:[%s197 + $0x6b8] sm:$0xff]
        %v432 = vmax.f32 %v216, 0.0
        %v433 = vmax.f32 %v217, 0.0
        %v434 = vmax.f32 %v218, 0.0
        %v435 = vmax.f32 %v219, 0.0
        %v436 = vmax.f32 %v220, 0.0
        %v437 = vmax.f32 %v221, 0.0
        %v438 = vmax.f32 %v222, 0.0
        %v439 = vmax.f32 %v223, 0.0
        %v440 = vmax.f32 %v224, 0.0
        %v441 = vmax.f32 %v225, 0.0
        %v442 = vmax.f32 %v226, 0.0
        %v443 = vmax.f32 %v227, 0.0
        %v444 = vmax.f32 %v228, 0.0
        %v445 = vmax.f32 %v229, 0.0
        %v446 = vmax.f32 %v230, 0.0
        %v447 = vmax.f32 %v231, 0.0
        %v448 = vmax.f32 %v232, 0.0
        %v449 = vmax.f32 %v233, 0.0
        %v450 = vmax.f32 %v234, 0.0
        %v451 = vmax.f32 %v235, 0.0
        %v452 = vmax.f32 %v236, 0.0
        %v453 = vmax.f32 %v237, 0.0
        %v454 = vmax.f32 %v238, 0.0
        %v455 = vmax.f32 %v239, 0.0
        %v456 = vmax.f32 %v240, 0.0
        %v457 = vmax.f32 %v241, 0.0
        %v458 = vmax.f32 %v242, 0.0
        %v459 = vmax.f32 %v243, 0.0
        %v460 = vmax.f32 %v244, 0.0
        %v461 = vmax.f32 %v245, 0.0
        %v462 = vmax.f32 %v246, 0.0
        %v463 = vmax.f32 %v247, 0.0
        %v464 = vmax.f32 %v248, 0.0
        %v465 = vmax.f32 %v249, 0.0
        %v466 = vmax.f32 %v250, 0.0
        %v467 = vmax.f32 %v251, 0.0
        %v468 = vmax.f32 %v252, 0.0
        %v469 = vmax.f32 %v253, 0.0
        %v470 = vmax.f32 %v254, 0.0
        %v471 = vmax.f32 %v255, 0.0
        %v472 = vmax.f32 %v256, 0.0
        %v473 = vmax.f32 %v257, 0.0
        %v474 = vmax.f32 %v258, 0.0
        %v475 = vmax.f32 %v259, 0.0
        %v476 = vmax.f32 %v260, 0.0
        %v477 = vmax.f32 %v261, 0.0
        %v478 = vmax.f32 %v262, 0.0
        %v479 = vmax.f32 %v263, 0.0
        %v480 = vmax.f32 %v264, 0.0
        %v481 = vmax.f32 %v265, 0.0
        %v482 = vmax.f32 %v266, 0.0
        %v483 = vmax.f32 %v267, 0.0
        %v484 = vmax.f32 %v268, 0.0
        %v485 = vmax.f32 %v269, 0.0
        %v486 = vmax.f32 %v270, 0.0
        %v487 = vmax.f32 %v271, 0.0
        %v488 = vmax.f32 %v272, 0.0
        %v489 = vmax.f32 %v273, 0.0
        %v490 = vmax.f32 %v274, 0.0
        %v491 = vmax.f32 %v275, 0.0
        %v492 = vmax.f32 %v276, 0.0
        %v493 = vmax.f32 %v277, 0.0
        %v494 = vmax.f32 %v278, 0.0
        %v495 = vmax.f32 %v279, 0.0
        %v496 = vmax.f32 %v280, 0.0
        %v497 = vmax.f32 %v281, 0.0
        %v498 = vmax.f32 %v282, 0.0
        %v499 = vmax.f32 %v283, 0.0
        %v500 = vmax.f32 %v284, 0.0
        %v501 = vmax.f32 %v285, 0.0
        %v502 = vmax.f32 %v286, 0.0
        %v503 = vmax.f32 %v287, 0.0
        %v504 = vmax.f32 %v288, 0.0
        %v505 = vmax.f32 %v289, 0.0
        %v506 = vmax.f32 %v290, 0.0
        %v507 = vmax.f32 %v291, 0.0
        %v508 = vmax.f32 %v292, 0.0
        %v509 = vmax.f32 %v293, 0.0
        %v510 = vmax.f32 %v294, 0.0
        %v511 = vmax.f32 %v295, 0.0
        %v512 = vmax.f32 %v296, 0.0
        %v513 = vmax.f32 %v297, 0.0
        %v514 = vmax.f32 %v298, 0.0
        %v515 = vmax.f32 %v299, 0.0
        %v516 = vmax.f32 %v300, 0.0
        %v517 = vmax.f32 %v301, 0.0
        %v518 = vmax.f32 %v302, 0.0
        %v519 = vmax.f32 %v303, 0.0
        %v520 = vmax.f32 %v304, 0.0
        %v521 = vmax.f32 %v305, 0.0
        %v522 = vmax.f32 %v306, 0.0
        %v523 = vmax.f32 %v307, 0.0
        %v524 = vmax.f32 %v308, 0.0
        %v525 = vmax.f32 %v309, 0.0
        %v526 = vmax.f32 %v310, 0.0
        %v527 = vmax.f32 %v311, 0.0
        %v528 = vmax.f32 %v312, 0.0
        %v529 = vmax.f32 %v313, 0.0
        %v530 = vmax.f32 %v314, 0.0
        %v531 = vmax.f32 %v315, 0.0
        %v532 = vmax.f32 %v316, 0.0
        %v533 = vmax.f32 %v317, 0.0
        %v534 = vmax.f32 %v318, 0.0
        %v535 = vmax.f32 %v319, 0.0
        %v536 = vmax.f32 %v320, 0.0
        %v537 = vmax.f32 %v321, 0.0
        %v538 = vmax.f32 %v322, 0.0
        %v539 = vmax.f32 %v323, 0.0
        %v540 = vmax.f32 %v324, 0.0
        %v541 = vmax.f32 %v325, 0.0
        %v542 = vmax.f32 %v326, 0.0
        %v543 = vmax.f32 %v327, 0.0
        %v544 = vmax.f32 %v328, 0.0
        %v545 = vmax.f32 %v329, 0.0
        %v546 = vmax.f32 %v330, 0.0
        %v547 = vmax.f32 %v331, 0.0
        %v548 = vmax.f32 %v332, 0.0
        %v549 = vmax.f32 %v333, 0.0
        %v550 = vmax.f32 %v334, 0.0
        %v551 = vmax.f32 %v335, 0.0
        %v552 = vmax.f32 %v336, 0.0
        %v553 = vmax.f32 %v337, 0.0
        %v554 = vmax.f32 %v338, 0.0
        %v555 = vmax.f32 %v339, 0.0
        %v556 = vmax.f32 %v340, 0.0
        %v557 = vmax.f32 %v341, 0.0
        %v558 = vmax.f32 %v342, 0.0
        %v559 = vmax.f32 %v343, 0.0
        %v560 = vmax.f32 %v344, 0.0
        %v561 = vmax.f32 %v345, 0.0
        %v562 = vmax.f32 %v346, 0.0
        %v563 = vmax.f32 %v347, 0.0
        %v564 = vmax.f32 %v348, 0.0
        %v565 = vmax.f32 %v349, 0.0
        %v566 = vmax.f32 %v350, 0.0
        %v567 = vmax.f32 %v351, 0.0
        %v568 = vmax.f32 %v352, 0.0
        %v569 = vmax.f32 %v353, 0.0
        %v570 = vmax.f32 %v354, 0.0
        %v571 = vmax.f32 %v355, 0.0
        %v572 = vmax.f32 %v356, 0.0
        %v573 = vmax.f32 %v357, 0.0
        %v574 = vmax.f32 %v358, 0.0
        %v575 = vmax.f32 %v359, 0.0
        %v576 = vmax.f32 %v360, 0.0
        %v577 = vmax.f32 %v361, 0.0
        %v578 = vmax.f32 %v362, 0.0
        %v579 = vmax.f32 %v363, 0.0
        %v580 = vmax.f32 %v364, 0.0
        %v581 = vmax.f32 %v365, 0.0
        %v582 = vmax.f32 %v366, 0.0
        %v583 = vmax.f32 %v367, 0.0
        %v584 = vmax.f32 %v368, 0.0
        %v585 = vmax.f32 %v369, 0.0
        %v586 = vmax.f32 %v370, 0.0
        %v587 = vmax.f32 %v371, 0.0
        %v588 = vmax.f32 %v372, 0.0
        %v589 = vmax.f32 %v373, 0.0
        %v590 = vmax.f32 %v374, 0.0
        %v591 = vmax.f32 %v375, 0.0
        %v592 = vmax.f32 %v376, 0.0
        %v593 = vmax.f32 %v377, 0.0
        %v594 = vmax.f32 %v378, 0.0
        %v595 = vmax.f32 %v379, 0.0
        %v596 = vmax.f32 %v380, 0.0
        %v597 = vmax.f32 %v381, 0.0
        %v598 = vmax.f32 %v382, 0.0
        %v599 = vmax.f32 %v383, 0.0
        %v600 = vmax.f32 %v384, 0.0
        %v601 = vmax.f32 %v385, 0.0
        %v602 = vmax.f32 %v386, 0.0
        %v603 = vmax.f32 %v387, 0.0
        %v604 = vmax.f32 %v388, 0.0
        %v605 = vmax.f32 %v389, 0.0
        %v606 = vmax.f32 %v390, 0.0
        %v607 = vmax.f32 %v391, 0.0
        %v608 = vmax.f32 %v392, 0.0
        %v609 = vmax.f32 %v393, 0.0
        %v610 = vmax.f32 %v394, 0.0
        %v611 = vmax.f32 %v395, 0.0
        %v612 = vmax.f32 %v396, 0.0
        %v613 = vmax.f32 %v397, 0.0
        %v614 = vmax.f32 %v398, 0.0
        %v615 = vmax.f32 %v399, 0.0
        %v616 = vmax.f32 %v400, 0.0
        %v617 = vmax.f32 %v401, 0.0
        %v618 = vmax.f32 %v402, 0.0
        %v619 = vmax.f32 %v403, 0.0
        %v620 = vmax.f32 %v404, 0.0
        %v621 = vmax.f32 %v405, 0.0
        %v622 = vmax.f32 %v406, 0.0
        %v623 = vmax.f32 %v407, 0.0
        %v624 = vmax.f32 %v408, 0.0
        %v625 = vmax.f32 %v409, 0.0
        %v626 = vmax.f32 %v410, 0.0
        %v627 = vmax.f32 %v411, 0.0
        %v628 = vmax.f32 %v412, 0.0
        %v629 = vmax.f32 %v413, 0.0
        %v630 = vmax.f32 %v414, 0.0
        %v631 = vmax.f32 %v415, 0.0
        %v632 = vmax.f32 %v416, 0.0
        %v633 = vmax.f32 %v417, 0.0
        %v634 = vmax.f32 %v418, 0.0
        %v635 = vmax.f32 %v419, 0.0
        %v636 = vmax.f32 %v420, 0.0
        %v637 = vmax.f32 %v421, 0.0
        %v638 = vmax.f32 %v422, 0.0
        %v639 = vmax.f32 %v423, 0.0
        %v640 = vmax.f32 %v424, 0.0
        %v641 = vmax.f32 %v425, 0.0
        %v642 = vmax.f32 %v426, 0.0
        %v643 = vmax.f32 %v427, 0.0
        %v644 = vmax.f32 %v428, 0.0
        %v645 = vmax.f32 %v429, 0.0
        %v646 = vmax.f32 %v430, 0.0
        %v647 = vmax.f32 %v431, 0.0
        %648 = vst [vmem:[%s176] sm:$0xff] %v432
        %649 = vst [vmem:[%s176 + $0x8] sm:$0xff] %v433
        %650 = vst [vmem:[%s176 + $0x10] sm:$0xff] %v434
        %651 = vst [vmem:[%s176 + $0x18] sm:$0xff] %v435
        %652 = vst [vmem:[%s176 + $0x20] sm:$0xff] %v436
        %653 = vst [vmem:[%s176 + $0x28] sm:$0xff] %v437
        %654 = vst [vmem:[%s176 + $0x30] sm:$0xff] %v438
        %655 = vst [vmem:[%s176 + $0x38] sm:$0xff] %v439
        %656 = vst [vmem:[%s176 + $0x40] sm:$0xff] %v440
        %657 = vst [vmem:[%s176 + $0x48] sm:$0xff] %v441
        %658 = vst [vmem:[%s176 + $0x50] sm:$0xff] %v442
        %vm659 = vcmask 261120
        %660 = vst.msk [vmem:[%s176 + $0x58] sm:$0xff] %vm659, %v443
        %661 = vst [vmem:[%s176 + $0x60] sm:$0xff] %v444
        %662 = vst [vmem:[%s176 + $0x68] sm:$0xff] %v445
        %663 = vst [vmem:[%s176 + $0x70] sm:$0xff] %v446
        %664 = vst [vmem:[%s176 + $0x78] sm:$0xff] %v447
        %665 = vst [vmem:[%s176 + $0x80] sm:$0xff] %v448
        %666 = vst [vmem:[%s176 + $0x88] sm:$0xff] %v449
        %667 = vst [vmem:[%s176 + $0x90] sm:$0xff] %v450
        %668 = vst [vmem:[%s176 + $0x98] sm:$0xff] %v451
        %669 = vst [vmem:[%s176 + $0xa0] sm:$0xff] %v452
        %670 = vst [vmem:[%s176 + $0xa8] sm:$0xff] %v453
        %671 = vst [vmem:[%s176 + $0xb0] sm:$0xff] %v454
        %672 = vst.msk [vmem:[%s176 + $0xb8] sm:$0xff] %vm659, %v455
        %673 = vst [vmem:[%s176 + $0xc0] sm:$0xff] %v456
        %674 = vst [vmem:[%s176 + $0xc8] sm:$0xff] %v457
        %675 = vst [vmem:[%s176 + $0xd0] sm:$0xff] %v458
        %676 = vst [vmem:[%s176 + $0xd8] sm:$0xff] %v459
        %677 = vst [vmem:[%s176 + $0xe0] sm:$0xff] %v460
        %678 = vst [vmem:[%s176 + $0xe8] sm:$0xff] %v461
        %679 = vst [vmem:[%s176 + $0xf0] sm:$0xff] %v462
        %680 = vst [vmem:[%s176 + $0xf8] sm:$0xff] %v463
        %681 = vst [vmem:[%s176 + $0x100] sm:$0xff] %v464
        %682 = vst [vmem:[%s176 + $0x108] sm:$0xff] %v465
        %683 = vst [vmem:[%s176 + $0x110] sm:$0xff] %v466
        %684 = vst.msk [vmem:[%s176 + $0x118] sm:$0xff] %vm659, %v467
        %685 = vst [vmem:[%s176 + $0x120] sm:$0xff] %v468
        %686 = vst [vmem:[%s176 + $0x128] sm:$0xff] %v469
        %687 = vst [vmem:[%s176 + $0x130] sm:$0xff] %v470
        %688 = vst [vmem:[%s176 + $0x138] sm:$0xff] %v471
        %689 = vst [vmem:[%s176 + $0x140] sm:$0xff] %v472
        %690 = vst [vmem:[%s176 + $0x148] sm:$0xff] %v473
        %691 = vst [vmem:[%s176 + $0x150] sm:$0xff] %v474
        %692 = vst [vmem:[%s176 + $0x158] sm:$0xff] %v475
        %693 = vst [vmem:[%s176 + $0x160] sm:$0xff] %v476
        %694 = vst [vmem:[%s176 + $0x168] sm:$0xff] %v477
        %695 = vst [vmem:[%s176 + $0x170] sm:$0xff] %v478
        %696 = vst.msk [vmem:[%s176 + $0x178] sm:$0xff] %vm659, %v479
        %697 = vst [vmem:[%s176 + $0x180] sm:$0xff] %v480
        %698 = vst [vmem:[%s176 + $0x188] sm:$0xff] %v481
        %699 = vst [vmem:[%s176 + $0x190] sm:$0xff] %v482
        %700 = vst [vmem:[%s176 + $0x198] sm:$0xff] %v483
        %701 = vst [vmem:[%s176 + $0x1a0] sm:$0xff] %v484
        %702 = vst [vmem:[%s176 + $0x1a8] sm:$0xff] %v485
        %703 = vst [vmem:[%s176 + $0x1b0] sm:$0xff] %v486
        %704 = vst [vmem:[%s176 + $0x1b8] sm:$0xff] %v487
        %705 = vst [vmem:[%s176 + $0x1c0] sm:$0xff] %v488
        %706 = vst [vmem:[%s176 + $0x1c8] sm:$0xff] %v489
        %707 = vst [vmem:[%s176 + $0x1d0] sm:$0xff] %v490
        %708 = vst.msk [vmem:[%s176 + $0x1d8] sm:$0xff] %vm659, %v491
        %709 = vst [vmem:[%s176 + $0x1e0] sm:$0xff] %v492
        %710 = vst [vmem:[%s176 + $0x1e8] sm:$0xff] %v493
        %711 = vst [vmem:[%s176 + $0x1f0] sm:$0xff] %v494
        %712 = vst [vmem:[%s176 + $0x1f8] sm:$0xff] %v495
        %713 = vst [vmem:[%s176 + $0x200] sm:$0xff] %v496
        %714 = vst [vmem:[%s176 + $0x208] sm:$0xff] %v497
        %715 = vst [vmem:[%s176 + $0x210] sm:$0xff] %v498
        %716 = vst [vmem:[%s176 + $0x218] sm:$0xff] %v499
        %717 = vst [vmem:[%s176 + $0x220] sm:$0xff] %v500
        %718 = vst [vmem:[%s176 + $0x228] sm:$0xff] %v501
        %719 = vst [vmem:[%s176 + $0x230] sm:$0xff] %v502
        %720 = vst.msk [vmem:[%s176 + $0x238] sm:$0xff] %vm659, %v503
        %721 = vst [vmem:[%s176 + $0x240] sm:$0xff] %v504
        %722 = vst [vmem:[%s176 + $0x248] sm:$0xff] %v505
        %723 = vst [vmem:[%s176 + $0x250] sm:$0xff] %v506
        %724 = vst [vmem:[%s176 + $0x258] sm:$0xff] %v507
        %725 = vst [vmem:[%s176 + $0x260] sm:$0xff] %v508
        %726 = vst [vmem:[%s176 + $0x268] sm:$0xff] %v509
        %727 = vst [vmem:[%s176 + $0x270] sm:$0xff] %v510
        %728 = vst [vmem:[%s176 + $0x278] sm:$0xff] %v511
        %729 = vst [vmem:[%s176 + $0x280] sm:$0xff] %v512
        %730 = vst [vmem:[%s176 + $0x288] sm:$0xff] %v513
        %731 = vst [vmem:[%s176 + $0x290] sm:$0xff] %v514
        %732 = vst.msk [vmem:[%s176 + $0x298] sm:$0xff] %vm659, %v515
        %733 = vst [vmem:[%s176 + $0x2a0] sm:$0xff] %v516
        %734 = vst [vmem:[%s176 + $0x2a8] sm:$0xff] %v517
        %735 = vst [vmem:[%s176 + $0x2b0] sm:$0xff] %v518
        %736 = vst [vmem:[%s176 + $0x2b8] sm:$0xff] %v519
        %737 = vst [vmem:[%s176 + $0x2c0] sm:$0xff] %v520
        %738 = vst [vmem:[%s176 + $0x2c8] sm:$0xff] %v521
        %739 = vst [vmem:[%s176 + $0x2d0] sm:$0xff] %v522
        %740 = vst [vmem:[%s176 + $0x2d8] sm:$0xff] %v523
        %741 = vst [vmem:[%s176 + $0x2e0] sm:$0xff] %v524
        %742 = vst [vmem:[%s176 + $0x2e8] sm:$0xff] %v525
        %743 = vst [vmem:[%s176 + $0x2f0] sm:$0xff] %v526
        %744 = vst.msk [vmem:[%s176 + $0x2f8] sm:$0xff] %vm659, %v527
        %745 = vst [vmem:[%s176 + $0x300] sm:$0xff] %v528
        %746 = vst [vmem:[%s176 + $0x308] sm:$0xff] %v529
        %747 = vst [vmem:[%s176 + $0x310] sm:$0xff] %v530
        %748 = vst [vmem:[%s176 + $0x318] sm:$0xff] %v531
        %749 = vst [vmem:[%s176 + $0x320] sm:$0xff] %v532
        %750 = vst [vmem:[%s176 + $0x328] sm:$0xff] %v533
        %751 = vst [vmem:[%s176 + $0x330] sm:$0xff] %v534
        %752 = vst [vmem:[%s176 + $0x338] sm:$0xff] %v535
        %753 = vst [vmem:[%s176 + $0x340] sm:$0xff] %v536
        %754 = vst [vmem:[%s176 + $0x348] sm:$0xff] %v537
        %755 = vst [vmem:[%s176 + $0x350] sm:$0xff] %v538
        %756 = vst.msk [vmem:[%s176 + $0x358] sm:$0xff] %vm659, %v539
        %757 = vst [vmem:[%s176 + $0x360] sm:$0xff] %v540
        %758 = vst [vmem:[%s176 + $0x368] sm:$0xff] %v541
        %759 = vst [vmem:[%s176 + $0x370] sm:$0xff] %v542
        %760 = vst [vmem:[%s176 + $0x378] sm:$0xff] %v543
        %761 = vst [vmem:[%s176 + $0x380] sm:$0xff] %v544
        %762 = vst [vmem:[%s176 + $0x388] sm:$0xff] %v545
        %763 = vst [vmem:[%s176 + $0x390] sm:$0xff] %v546
        %764 = vst [vmem:[%s176 + $0x398] sm:$0xff] %v547
        %765 = vst [vmem:[%s176 + $0x3a0] sm:$0xff] %v548
        %766 = vst [vmem:[%s176 + $0x3a8] sm:$0xff] %v549
        %767 = vst [vmem:[%s176 + $0x3b0] sm:$0xff] %v550
        %768 = vst.msk [vmem:[%s176 + $0x3b8] sm:$0xff] %vm659, %v551
        %769 = vst [vmem:[%s176 + $0x3c0] sm:$0xff] %v552
        %770 = vst [vmem:[%s176 + $0x3c8] sm:$0xff] %v553
        %771 = vst [vmem:[%s176 + $0x3d0] sm:$0xff] %v554
        %772 = vst [vmem:[%s176 + $0x3d8] sm:$0xff] %v555
        %773 = vst [vmem:[%s176 + $0x3e0] sm:$0xff] %v556
        %774 = vst [vmem:[%s176 + $0x3e8] sm:$0xff] %v557
        %775 = vst [vmem:[%s176 + $0x3f0] sm:$0xff] %v558
        %776 = vst [vmem:[%s176 + $0x3f8] sm:$0xff] %v559
        %777 = vst [vmem:[%s176 + $0x400] sm:$0xff] %v560
        %778 = vst [vmem:[%s176 + $0x408] sm:$0xff] %v561
        %779 = vst [vmem:[%s176 + $0x410] sm:$0xff] %v562
        %780 = vst.msk [vmem:[%s176 + $0x418] sm:$0xff] %vm659, %v563
        %781 = vst [vmem:[%s176 + $0x420] sm:$0xff] %v564
        %782 = vst [vmem:[%s176 + $0x428] sm:$0xff] %v565
        %783 = vst [vmem:[%s176 + $0x430] sm:$0xff] %v566
        %784 = vst [vmem:[%s176 + $0x438] sm:$0xff] %v567
        %785 = vst [vmem:[%s176 + $0x440] sm:$0xff] %v568
        %786 = vst [vmem:[%s176 + $0x448] sm:$0xff] %v569
        %787 = vst [vmem:[%s176 + $0x450] sm:$0xff] %v570
        %788 = vst [vmem:[%s176 + $0x458] sm:$0xff] %v571
        %789 = vst [vmem:[%s176 + $0x460] sm:$0xff] %v572
        %790 = vst [vmem:[%s176 + $0x468] sm:$0xff] %v573
        %791 = vst [vmem:[%s176 + $0x470] sm:$0xff] %v574
        %792 = vst.msk [vmem:[%s176 + $0x478] sm:$0xff] %vm659, %v575
        %793 = vst [vmem:[%s176 + $0x480] sm:$0xff] %v576
        %794 = vst [vmem:[%s176 + $0x488] sm:$0xff] %v577
        %795 = vst [vmem:[%s176 + $0x490] sm:$0xff] %v578
        %796 = vst [vmem:[%s176 + $0x498] sm:$0xff] %v579
        %797 = vst [vmem:[%s176 + $0x4a0] sm:$0xff] %v580
        %798 = vst [vmem:[%s176 + $0x4a8] sm:$0xff] %v581
        %799 = vst [vmem:[%s176 + $0x4b0] sm:$0xff] %v582
        %800 = vst [vmem:[%s176 + $0x4b8] sm:$0xff] %v583
        %801 = vst [vmem:[%s176 + $0x4c0] sm:$0xff] %v584
        %802 = vst [vmem:[%s176 + $0x4c8] sm:$0xff] %v585
        %803 = vst [vmem:[%s176 + $0x4d0] sm:$0xff] %v586
        %804 = vst.msk [vmem:[%s176 + $0x4d8] sm:$0xff] %vm659, %v587
        %805 = vst [vmem:[%s176 + $0x4e0] sm:$0xff] %v588
        %806 = vst [vmem:[%s176 + $0x4e8] sm:$0xff] %v589
        %807 = vst [vmem:[%s176 + $0x4f0] sm:$0xff] %v590
        %808 = vst [vmem:[%s176 + $0x4f8] sm:$0xff] %v591
        %809 = vst [vmem:[%s176 + $0x500] sm:$0xff] %v592
        %810 = vst [vmem:[%s176 + $0x508] sm:$0xff] %v593
        %811 = vst [vmem:[%s176 + $0x510] sm:$0xff] %v594
        %812 = vst [vmem:[%s176 + $0x518] sm:$0xff] %v595
        %813 = vst [vmem:[%s176 + $0x520] sm:$0xff] %v596
        %814 = vst [vmem:[%s176 + $0x528] sm:$0xff] %v597
        %815 = vst [vmem:[%s176 + $0x530] sm:$0xff] %v598
        %816 = vst.msk [vmem:[%s176 + $0x538] sm:$0xff] %vm659, %v599
        %817 = vst [vmem:[%s176 + $0x540] sm:$0xff] %v600
        %818 = vst [vmem:[%s176 + $0x548] sm:$0xff] %v601
        %819 = vst [vmem:[%s176 + $0x550] sm:$0xff] %v602
        %820 = vst [vmem:[%s176 + $0x558] sm:$0xff] %v603
        %821 = vst [vmem:[%s176 + $0x560] sm:$0xff] %v604
        %822 = vst [vmem:[%s176 + $0x568] sm:$0xff] %v605
        %823 = vst [vmem:[%s176 + $0x570] sm:$0xff] %v606
        %824 = vst [vmem:[%s176 + $0x578] sm:$0xff] %v607
        %825 = vst [vmem:[%s176 + $0x580] sm:$0xff] %v608
        %826 = vst [vmem:[%s176 + $0x588] sm:$0xff] %v609
        %827 = vst [vmem:[%s176 + $0x590] sm:$0xff] %v610
        %828 = vst.msk [vmem:[%s176 + $0x598] sm:$0xff] %vm659, %v611
        %829 = vst [vmem:[%s176 + $0x5a0] sm:$0xff] %v612
        %830 = vst [vmem:[%s176 + $0x5a8] sm:$0xff] %v613
        %831 = vst [vmem:[%s176 + $0x5b0] sm:$0xff] %v614
        %832 = vst [vmem:[%s176 + $0x5b8] sm:$0xff] %v615
        %833 = vst [vmem:[%s176 + $0x5c0] sm:$0xff] %v616
        %834 = vst [vmem:[%s176 + $0x5c8] sm:$0xff] %v617
        %835 = vst [vmem:[%s176 + $0x5d0] sm:$0xff] %v618
        %836 = vst [vmem:[%s176 + $0x5d8] sm:$0xff] %v619
        %837 = vst [vmem:[%s176 + $0x5e0] sm:$0xff] %v620
        %838 = vst [vmem:[%s176 + $0x5e8] sm:$0xff] %v621
        %839 = vst [vmem:[%s176 + $0x5f0] sm:$0xff] %v622
        %840 = vst.msk [vmem:[%s176 + $0x5f8] sm:$0xff] %vm659, %v623
        %841 = vst [vmem:[%s176 + $0x600] sm:$0xff] %v624
        %842 = vst [vmem:[%s176 + $0x608] sm:$0xff] %v625
        %843 = vst [vmem:[%s176 + $0x610] sm:$0xff] %v626
        %844 = vst [vmem:[%s176 + $0x618] sm:$0xff] %v627
        %845 = vst [vmem:[%s176 + $0x620] sm:$0xff] %v628
        %846 = vst [vmem:[%s176 + $0x628] sm:$0xff] %v629
        %847 = vst [vmem:[%s176 + $0x630] sm:$0xff] %v630
        %848 = vst [vmem:[%s176 + $0x638] sm:$0xff] %v631
        %849 = vst [vmem:[%s176 + $0x640] sm:$0xff] %v632
        %850 = vst [vmem:[%s176 + $0x648] sm:$0xff] %v633
        %851 = vst [vmem:[%s176 + $0x650] sm:$0xff] %v634
        %852 = vst.msk [vmem:[%s176 + $0x658] sm:$0xff] %vm659, %v635
        %853 = vst [vmem:[%s176 + $0x660] sm:$0xff] %v636
        %854 = vst [vmem:[%s176 + $0x668] sm:$0xff] %v637
        %855 = vst [vmem:[%s176 + $0x670] sm:$0xff] %v638
        %856 = vst [vmem:[%s176 + $0x678] sm:$0xff] %v639
        %857 = vst [vmem:[%s176 + $0x680] sm:$0xff] %v640
        %858 = vst [vmem:[%s176 + $0x688] sm:$0xff] %v641
        %859 = vst [vmem:[%s176 + $0x690] sm:$0xff] %v642
        %860 = vst [vmem:[%s176 + $0x698] sm:$0xff] %v643
        %861 = vst [vmem:[%s176 + $0x6a0] sm:$0xff] %v644
        %862 = vst [vmem:[%s176 + $0x6a8] sm:$0xff] %v645
        %863 = vst [vmem:[%s176 + $0x6b0] sm:$0xff] %v646
        %864 = vst.msk [vmem:[%s176 + $0x6b8] sm:$0xff] %vm659, %v647
        %v865 = vlaneseq
        %v866 = vshrl.u32 %v865, 7
        %v867 = vadd.s32 %v866, 8
        %v868 = vadd.s32 %v866, 16
        %v869 = vadd.s32 %v866, 24
        %v870 = vadd.s32 %v866, 32
        %v871 = vadd.s32 %v866, 40
        %v872 = vadd.s32 %v866, 48
        %v873 = vadd.s32 %v866, 56
        %v874 = vadd.s32 %v866, 64
        %v875 = vadd.s32 %v866, 72
        %v876 = vadd.s32 %v866, 80
        %v877 = vadd.s32 %v866, 88
        %v878 = vadd.s32 %v866, 96
        %v879 = vadd.s32 %v866, 104
        %v880 = vadd.s32 %v866, 112
        %v881 = vadd.s32 %v866, 120
        %v882 = vadd.s32 %v866, 128
        %v883 = vadd.s32 %v866, 136
        %s884 = smul.u32 %s18, 144
        %s885 = ssub.s32 280, %s884
        %v886 = vstv %s885
        %vm887 = vcmp.lt.s32.totalorder %v866, %v886
        %vm888 = vcmp.lt.s32.totalorder %v867, %v886
        %vm889 = vcmp.lt.s32.totalorder %v868, %v886
        %vm890 = vcmp.lt.s32.totalorder %v869, %v886
        %vm891 = vcmp.lt.s32.totalorder %v870, %v886
        %vm892 = vcmp.lt.s32.totalorder %v871, %v886
        %vm893 = vcmp.lt.s32.totalorder %v872, %v886
        %vm894 = vcmp.lt.s32.totalorder %v873, %v886
        %vm895 = vcmp.lt.s32.totalorder %v874, %v886
        %vm896 = vcmp.lt.s32.totalorder %v875, %v886
        %vm897 = vcmp.lt.s32.totalorder %v876, %v886
        %vm898 = vcmp.lt.s32.totalorder %v877, %v886
        %vm899 = vcmp.lt.s32.totalorder %v878, %v886
        %vm900 = vcmp.lt.s32.totalorder %v879, %v886
        %vm901 = vcmp.lt.s32.totalorder %v880, %v886
        %vm902 = vcmp.lt.s32.totalorder %v881, %v886
        %vm903 = vcmp.lt.s32.totalorder %v882, %v886
        %vm904 = vcmp.lt.s32.totalorder %v883, %v886
        %v905 = vsel %vm887, %v216, 0.0
        %v906 = vsel %vm887, %v217, 0.0
        %v907 = vsel %vm887, %v218, 0.0
        %v908 = vsel %vm887, %v219, 0.0
        %v909 = vsel %vm887, %v220, 0.0
        %v910 = vsel %vm887, %v221, 0.0
        %v911 = vsel %vm887, %v222, 0.0
        %v912 = vsel %vm887, %v223, 0.0
        %v913 = vsel %vm887, %v224, 0.0
        %v914 = vsel %vm887, %v225, 0.0
        %v915 = vsel %vm887, %v226, 0.0
        %v916 = vsel %vm887, %v227, 0.0
        %v917 = vsel %vm888, %v228, 0.0
        %v918 = vsel %vm888, %v229, 0.0
        %v919 = vsel %vm888, %v230, 0.0
        %v920 = vsel %vm888, %v231, 0.0
        %v921 = vsel %vm888, %v232, 0.0
        %v922 = vsel %vm888, %v233, 0.0
        %v923 = vsel %vm888, %v234, 0.0
        %v924 = vsel %vm888, %v235, 0.0
        %v925 = vsel %vm888, %v236, 0.0
        %v926 = vsel %vm888, %v237, 0.0
        %v927 = vsel %vm888, %v238, 0.0
        %v928 = vsel %vm888, %v239, 0.0
        %v929 = vsel %vm889, %v240, 0.0
        %v930 = vsel %vm889, %v241, 0.0
        %v931 = vsel %vm889, %v242, 0.0
        %v932 = vsel %vm889, %v243, 0.0
        %v933 = vsel %vm889, %v244, 0.0
        %v934 = vsel %vm889, %v245, 0.0
        %v935 = vsel %vm889, %v246, 0.0
        %v936 = vsel %vm889, %v247, 0.0
        %v937 = vsel %vm889, %v248, 0.0
        %v938 = vsel %vm889, %v249, 0.0
        %v939 = vsel %vm889, %v250, 0.0
        %v940 = vsel %vm889, %v251, 0.0
        %v941 = vsel %vm890, %v252, 0.0
        %v942 = vsel %vm890, %v253, 0.0
        %v943 = vsel %vm890, %v254, 0.0
        %v944 = vsel %vm890, %v255, 0.0
        %v945 = vsel %vm890, %v256, 0.0
        %v946 = vsel %vm890, %v257, 0.0
        %v947 = vsel %vm890, %v258, 0.0
        %v948 = vsel %vm890, %v259, 0.0
        %v949 = vsel %vm890, %v260, 0.0
        %v950 = vsel %vm890, %v261, 0.0
        %v951 = vsel %vm890, %v262, 0.0
        %v952 = vsel %vm890, %v263, 0.0
        %v953 = vsel %vm891, %v264, 0.0
        %v954 = vsel %vm891, %v265, 0.0
        %v955 = vsel %vm891, %v266, 0.0
        %v956 = vsel %vm891, %v267, 0.0
        %v957 = vsel %vm891, %v268, 0.0
        %v958 = vsel %vm891, %v269, 0.0
        %v959 = vsel %vm891, %v270, 0.0
        %v960 = vsel %vm891, %v271, 0.0
        %v961 = vsel %vm891, %v272, 0.0
        %v962 = vsel %vm891, %v273, 0.0
        %v963 = vsel %vm891, %v274, 0.0
        %v964 = vsel %vm891, %v275, 0.0
        %v965 = vsel %vm892, %v276, 0.0
        %v966 = vsel %vm892, %v277, 0.0
        %v967 = vsel %vm892, %v278, 0.0
        %v968 = vsel %vm892, %v279, 0.0
        %v969 = vsel %vm892, %v280, 0.0
        %v970 = vsel %vm892, %v281, 0.0
        %v971 = vsel %vm892, %v282, 0.0
        %v972 = vsel %vm892, %v283, 0.0
        %v973 = vsel %vm892, %v284, 0.0
        %v974 = vsel %vm892, %v285, 0.0
        %v975 = vsel %vm892, %v286, 0.0
        %v976 = vsel %vm892, %v287, 0.0
        %v977 = vsel %vm893, %v288, 0.0
        %v978 = vsel %vm893, %v289, 0.0
        %v979 = vsel %vm893, %v290, 0.0
        %v980 = vsel %vm893, %v291, 0.0
        %v981 = vsel %vm893, %v292, 0.0
        %v982 = vsel %vm893, %v293, 0.0
        %v983 = vsel %vm893, %v294, 0.0
        %v984 = vsel %vm893, %v295, 0.0
        %v985 = vsel %vm893, %v296, 0.0
        %v986 = vsel %vm893, %v297, 0.0
        %v987 = vsel %vm893, %v298, 0.0
        %v988 = vsel %vm893, %v299, 0.0
        %v989 = vsel %vm894, %v300, 0.0
        %v990 = vsel %vm894, %v301, 0.0
        %v991 = vsel %vm894, %v302, 0.0
        %v992 = vsel %vm894, %v303, 0.0
        %v993 = vsel %vm894, %v304, 0.0
        %v994 = vsel %vm894, %v305, 0.0
        %v995 = vsel %vm894, %v306, 0.0
        %v996 = vsel %vm894, %v307, 0.0
        %v997 = vsel %vm894, %v308, 0.0
        %v998 = vsel %vm894, %v309, 0.0
        %v999 = vsel %vm894, %v310, 0.0
        %v1000 = vsel %vm894, %v311, 0.0
        %v1001 = vsel %vm895, %v312, 0.0
        %v1002 = vsel %vm895, %v313, 0.0
        %v1003 = vsel %vm895, %v314, 0.0
        %v1004 = vsel %vm895, %v315, 0.0
        %v1005 = vsel %vm895, %v316, 0.0
        %v1006 = vsel %vm895, %v317, 0.0
        %v1007 = vsel %vm895, %v318, 0.0
        %v1008 = vsel %vm895, %v319, 0.0
        %v1009 = vsel %vm895, %v320, 0.0
        %v1010 = vsel %vm895, %v321, 0.0
        %v1011 = vsel %vm895, %v322, 0.0
        %v1012 = vsel %vm895, %v323, 0.0
        %v1013 = vsel %vm896, %v324, 0.0
        %v1014 = vsel %vm896, %v325, 0.0
        %v1015 = vsel %vm896, %v326, 0.0
        %v1016 = vsel %vm896, %v327, 0.0
        %v1017 = vsel %vm896, %v328, 0.0
        %v1018 = vsel %vm896, %v329, 0.0
        %v1019 = vsel %vm896, %v330, 0.0
        %v1020 = vsel %vm896, %v331, 0.0
        %v1021 = vsel %vm896, %v332, 0.0
        %v1022 = vsel %vm896, %v333, 0.0
        %v1023 = vsel %vm896, %v334, 0.0
        %v1024 = vsel %vm896, %v335, 0.0
        %v1025 = vsel %vm897, %v336, 0.0
        %v1026 = vsel %vm897, %v337, 0.0
        %v1027 = vsel %vm897, %v338, 0.0
        %v1028 = vsel %vm897, %v339, 0.0
        %v1029 = vsel %vm897, %v340, 0.0
        %v1030 = vsel %vm897, %v341, 0.0
        %v1031 = vsel %vm897, %v342, 0.0
        %v1032 = vsel %vm897, %v343, 0.0
        %v1033 = vsel %vm897, %v344, 0.0
        %v1034 = vsel %vm897, %v345, 0.0
        %v1035 = vsel %vm897, %v346, 0.0
        %v1036 = vsel %vm897, %v347, 0.0
        %v1037 = vsel %vm898, %v348, 0.0
        %v1038 = vsel %vm898, %v349, 0.0
        %v1039 = vsel %vm898, %v350, 0.0
        %v1040 = vsel %vm898, %v351, 0.0
        %v1041 = vsel %vm898, %v352, 0.0
        %v1042 = vsel %vm898, %v353, 0.0
        %v1043 = vsel %vm898, %v354, 0.0
        %v1044 = vsel %vm898, %v355, 0.0
        %v1045 = vsel %vm898, %v356, 0.0
        %v1046 = vsel %vm898, %v357, 0.0
        %v1047 = vsel %vm898, %v358, 0.0
        %v1048 = vsel %vm898, %v359, 0.0
        %v1049 = vsel %vm899, %v360, 0.0
        %v1050 = vsel %vm899, %v361, 0.0
        %v1051 = vsel %vm899, %v362, 0.0
        %v1052 = vsel %vm899, %v363, 0.0
        %v1053 = vsel %vm899, %v364, 0.0
        %v1054 = vsel %vm899, %v365, 0.0
        %v1055 = vsel %vm899, %v366, 0.0
        %v1056 = vsel %vm899, %v367, 0.0
        %v1057 = vsel %vm899, %v368, 0.0
        %v1058 = vsel %vm899, %v369, 0.0
        %v1059 = vsel %vm899, %v370, 0.0
        %v1060 = vsel %vm899, %v371, 0.0
        %v1061 = vsel %vm900, %v372, 0.0
        %v1062 = vsel %vm900, %v373, 0.0
        %v1063 = vsel %vm900, %v374, 0.0
        %v1064 = vsel %vm900, %v375, 0.0
        %v1065 = vsel %vm900, %v376, 0.0
        %v1066 = vsel %vm900, %v377, 0.0
        %v1067 = vsel %vm900, %v378, 0.0
        %v1068 = vsel %vm900, %v379, 0.0
        %v1069 = vsel %vm900, %v380, 0.0
        %v1070 = vsel %vm900, %v381, 0.0
        %v1071 = vsel %vm900, %v382, 0.0
        %v1072 = vsel %vm900, %v383, 0.0
        %v1073 = vsel %vm901, %v384, 0.0
        %v1074 = vsel %vm901, %v385, 0.0
        %v1075 = vsel %vm901, %v386, 0.0
        %v1076 = vsel %vm901, %v387, 0.0
        %v1077 = vsel %vm901, %v388, 0.0
        %v1078 = vsel %vm901, %v389, 0.0
        %v1079 = vsel %vm901, %v390, 0.0
        %v1080 = vsel %vm901, %v391, 0.0
        %v1081 = vsel %vm901, %v392, 0.0
        %v1082 = vsel %vm901, %v393, 0.0
        %v1083 = vsel %vm901, %v394, 0.0
        %v1084 = vsel %vm901, %v395, 0.0
        %v1085 = vsel %vm902, %v396, 0.0
        %v1086 = vsel %vm902, %v397, 0.0
        %v1087 = vsel %vm902, %v398, 0.0
        %v1088 = vsel %vm902, %v399, 0.0
        %v1089 = vsel %vm902, %v400, 0.0
        %v1090 = vsel %vm902, %v401, 0.0
        %v1091 = vsel %vm902, %v402, 0.0
        %v1092 = vsel %vm902, %v403, 0.0
        %v1093 = vsel %vm902, %v404, 0.0
        %v1094 = vsel %vm902, %v405, 0.0
        %v1095 = vsel %vm902, %v406, 0.0
        %v1096 = vsel %vm902, %v407, 0.0
        %v1097 = vsel %vm903, %v408, 0.0
        %v1098 = vsel %vm903, %v409, 0.0
        %v1099 = vsel %vm903, %v410, 0.0
        %v1100 = vsel %vm903, %v411, 0.0
        %v1101 = vsel %vm903, %v412, 0.0
        %v1102 = vsel %vm903, %v413, 0.0
        %v1103 = vsel %vm903, %v414, 0.0
        %v1104 = vsel %vm903, %v415, 0.0
        %v1105 = vsel %vm903, %v416, 0.0
        %v1106 = vsel %vm903, %v417, 0.0
        %v1107 = vsel %vm903, %v418, 0.0
        %v1108 = vsel %vm903, %v419, 0.0
        %v1109 = vsel %vm904, %v420, 0.0
        %v1110 = vsel %vm904, %v421, 0.0
        %v1111 = vsel %vm904, %v422, 0.0
        %v1112 = vsel %vm904, %v423, 0.0
        %v1113 = vsel %vm904, %v424, 0.0
        %v1114 = vsel %vm904, %v425, 0.0
        %v1115 = vsel %vm904, %v426, 0.0
        %v1116 = vsel %vm904, %v427, 0.0
        %v1117 = vsel %vm904, %v428, 0.0
        %v1118 = vsel %vm904, %v429, 0.0
        %v1119 = vsel %vm904, %v430, 0.0
        %v1120 = vsel %vm904, %v431, 0.0
        %v1121 = vsel %vm887, %v432, 0.0
        %v1122 = vsel %vm887, %v433, 0.0
        %v1123 = vsel %vm887, %v434, 0.0
        %v1124 = vsel %vm887, %v435, 0.0
        %v1125 = vsel %vm887, %v436, 0.0
        %v1126 = vsel %vm887, %v437, 0.0
        %v1127 = vsel %vm887, %v438, 0.0
        %v1128 = vsel %vm887, %v439, 0.0
        %v1129 = vsel %vm887, %v440, 0.0
        %v1130 = vsel %vm887, %v441, 0.0
        %v1131 = vsel %vm887, %v442, 0.0
        %v1132 = vsel %vm887, %v443, 0.0
        %v1133 = vsel %vm888, %v444, 0.0
        %v1134 = vsel %vm888, %v445, 0.0
        %v1135 = vsel %vm888, %v446, 0.0
        %v1136 = vsel %vm888, %v447, 0.0
        %v1137 = vsel %vm888, %v448, 0.0
        %v1138 = vsel %vm888, %v449, 0.0
        %v1139 = vsel %vm888, %v450, 0.0
        %v1140 = vsel %vm888, %v451, 0.0
        %v1141 = vsel %vm888, %v452, 0.0
        %v1142 = vsel %vm888, %v453, 0.0
        %v1143 = vsel %vm888, %v454, 0.0
        %v1144 = vsel %vm888, %v455, 0.0
        %v1145 = vsel %vm889, %v456, 0.0
        %v1146 = vsel %vm889, %v457, 0.0
        %v1147 = vsel %vm889, %v458, 0.0
        %v1148 = vsel %vm889, %v459, 0.0
        %v1149 = vsel %vm889, %v460, 0.0
        %v1150 = vsel %vm889, %v461, 0.0
        %v1151 = vsel %vm889, %v462, 0.0
        %v1152 = vsel %vm889, %v463, 0.0
        %v1153 = vsel %vm889, %v464, 0.0
        %v1154 = vsel %vm889, %v465, 0.0
        %v1155 = vsel %vm889, %v466, 0.0
        %v1156 = vsel %vm889, %v467, 0.0
        %v1157 = vsel %vm890, %v468, 0.0
        %v1158 = vsel %vm890, %v469, 0.0
        %v1159 = vsel %vm890, %v470, 0.0
        %v1160 = vsel %vm890, %v471, 0.0
        %v1161 = vsel %vm890, %v472, 0.0
        %v1162 = vsel %vm890, %v473, 0.0
        %v1163 = vsel %vm890, %v474, 0.0
        %v1164 = vsel %vm890, %v475, 0.0
        %v1165 = vsel %vm890, %v476, 0.0
        %v1166 = vsel %vm890, %v477, 0.0
        %v1167 = vsel %vm890, %v478, 0.0
        %v1168 = vsel %vm890, %v479, 0.0
        %v1169 = vsel %vm891, %v480, 0.0
        %v1170 = vsel %vm891, %v481, 0.0
        %v1171 = vsel %vm891, %v482, 0.0
        %v1172 = vsel %vm891, %v483, 0.0
        %v1173 = vsel %vm891, %v484, 0.0
        %v1174 = vsel %vm891, %v485, 0.0
        %v1175 = vsel %vm891, %v486, 0.0
        %v1176 = vsel %vm891, %v487, 0.0
        %v1177 = vsel %vm891, %v488, 0.0
        %v1178 = vsel %vm891, %v489, 0.0
        %v1179 = vsel %vm891, %v490, 0.0
        %v1180 = vsel %vm891, %v491, 0.0
        %v1181 = vsel %vm892, %v492, 0.0
        %v1182 = vsel %vm892, %v493, 0.0
        %v1183 = vsel %vm892, %v494, 0.0
        %v1184 = vsel %vm892, %v495, 0.0
        %v1185 = vsel %vm892, %v496, 0.0
        %v1186 = vsel %vm892, %v497, 0.0
        %v1187 = vsel %vm892, %v498, 0.0
        %v1188 = vsel %vm892, %v499, 0.0
        %v1189 = vsel %vm892, %v500, 0.0
        %v1190 = vsel %vm892, %v501, 0.0
        %v1191 = vsel %vm892, %v502, 0.0
        %v1192 = vsel %vm892, %v503, 0.0
        %v1193 = vsel %vm893, %v504, 0.0
        %v1194 = vsel %vm893, %v505, 0.0
        %v1195 = vsel %vm893, %v506, 0.0
        %v1196 = vsel %vm893, %v507, 0.0
        %v1197 = vsel %vm893, %v508, 0.0
        %v1198 = vsel %vm893, %v509, 0.0
        %v1199 = vsel %vm893, %v510, 0.0
        %v1200 = vsel %vm893, %v511, 0.0
        %v1201 = vsel %vm893, %v512, 0.0
        %v1202 = vsel %vm893, %v513, 0.0
        %v1203 = vsel %vm893, %v514, 0.0
        %v1204 = vsel %vm893, %v515, 0.0
        %v1205 = vsel %vm894, %v516, 0.0
        %v1206 = vsel %vm894, %v517, 0.0
        %v1207 = vsel %vm894, %v518, 0.0
        %v1208 = vsel %vm894, %v519, 0.0
        %v1209 = vsel %vm894, %v520, 0.0
        %v1210 = vsel %vm894, %v521, 0.0
        %v1211 = vsel %vm894, %v522, 0.0
        %v1212 = vsel %vm894, %v523, 0.0
        %v1213 = vsel %vm894, %v524, 0.0
        %v1214 = vsel %vm894, %v525, 0.0
        %v1215 = vsel %vm894, %v526, 0.0
        %v1216 = vsel %vm894, %v527, 0.0
        %v1217 = vsel %vm895, %v528, 0.0
        %v1218 = vsel %vm895, %v529, 0.0
        %v1219 = vsel %vm895, %v530, 0.0
        %v1220 = vsel %vm895, %v531, 0.0
        %v1221 = vsel %vm895, %v532, 0.0
        %v1222 = vsel %vm895, %v533, 0.0
        %v1223 = vsel %vm895, %v534, 0.0
        %v1224 = vsel %vm895, %v535, 0.0
        %v1225 = vsel %vm895, %v536, 0.0
        %v1226 = vsel %vm895, %v537, 0.0
        %v1227 = vsel %vm895, %v538, 0.0
        %v1228 = vsel %vm895, %v539, 0.0
        %v1229 = vsel %vm896, %v540, 0.0
        %v1230 = vsel %vm896, %v541, 0.0
        %v1231 = vsel %vm896, %v542, 0.0
        %v1232 = vsel %vm896, %v543, 0.0
        %v1233 = vsel %vm896, %v544, 0.0
        %v1234 = vsel %vm896, %v545, 0.0
        %v1235 = vsel %vm896, %v546, 0.0
        %v1236 = vsel %vm896, %v547, 0.0
        %v1237 = vsel %vm896, %v548, 0.0
        %v1238 = vsel %vm896, %v549, 0.0
        %v1239 = vsel %vm896, %v550, 0.0
        %v1240 = vsel %vm896, %v551, 0.0
        %v1241 = vsel %vm897, %v552, 0.0
        %v1242 = vsel %vm897, %v553, 0.0
        %v1243 = vsel %vm897, %v554, 0.0
        %v1244 = vsel %vm897, %v555, 0.0
        %v1245 = vsel %vm897, %v556, 0.0
        %v1246 = vsel %vm897, %v557, 0.0
        %v1247 = vsel %vm897, %v558, 0.0
        %v1248 = vsel %vm897, %v559, 0.0
        %v1249 = vsel %vm897, %v560, 0.0
        %v1250 = vsel %vm897, %v561, 0.0
        %v1251 = vsel %vm897, %v562, 0.0
        %v1252 = vsel %vm897, %v563, 0.0
        %v1253 = vsel %vm898, %v564, 0.0
        %v1254 = vsel %vm898, %v565, 0.0
        %v1255 = vsel %vm898, %v566, 0.0
        %v1256 = vsel %vm898, %v567, 0.0
        %v1257 = vsel %vm898, %v568, 0.0
        %v1258 = vsel %vm898, %v569, 0.0
        %v1259 = vsel %vm898, %v570, 0.0
        %v1260 = vsel %vm898, %v571, 0.0
        %v1261 = vsel %vm898, %v572, 0.0
        %v1262 = vsel %vm898, %v573, 0.0
        %v1263 = vsel %vm898, %v574, 0.0
        %v1264 = vsel %vm898, %v575, 0.0
        %v1265 = vsel %vm899, %v576, 0.0
        %v1266 = vsel %vm899, %v577, 0.0
        %v1267 = vsel %vm899, %v578, 0.0
        %v1268 = vsel %vm899, %v579, 0.0
        %v1269 = vsel %vm899, %v580, 0.0
        %v1270 = vsel %vm899, %v581, 0.0
        %v1271 = vsel %vm899, %v582, 0.0
        %v1272 = vsel %vm899, %v583, 0.0
        %v1273 = vsel %vm899, %v584, 0.0
        %v1274 = vsel %vm899, %v585, 0.0
        %v1275 = vsel %vm899, %v586, 0.0
        %v1276 = vsel %vm899, %v587, 0.0
        %v1277 = vsel %vm900, %v588, 0.0
        %v1278 = vsel %vm900, %v589, 0.0
        %v1279 = vsel %vm900, %v590, 0.0
        %v1280 = vsel %vm900, %v591, 0.0
        %v1281 = vsel %vm900, %v592, 0.0
        %v1282 = vsel %vm900, %v593, 0.0
        %v1283 = vsel %vm900, %v594, 0.0
        %v1284 = vsel %vm900, %v595, 0.0
        %v1285 = vsel %vm900, %v596, 0.0
        %v1286 = vsel %vm900, %v597, 0.0
        %v1287 = vsel %vm900, %v598, 0.0
        %v1288 = vsel %vm900, %v599, 0.0
        %v1289 = vsel %vm901, %v600, 0.0
        %v1290 = vsel %vm901, %v601, 0.0
        %v1291 = vsel %vm901, %v602, 0.0
        %v1292 = vsel %vm901, %v603, 0.0
        %v1293 = vsel %vm901, %v604, 0.0
        %v1294 = vsel %vm901, %v605, 0.0
        %v1295 = vsel %vm901, %v606, 0.0
        %v1296 = vsel %vm901, %v607, 0.0
        %v1297 = vsel %vm901, %v608, 0.0
        %v1298 = vsel %vm901, %v609, 0.0
        %v1299 = vsel %vm901, %v610, 0.0
        %v1300 = vsel %vm901, %v611, 0.0
        %v1301 = vsel %vm902, %v612, 0.0
        %v1302 = vsel %vm902, %v613, 0.0
        %v1303 = vsel %vm902, %v614, 0.0
        %v1304 = vsel %vm902, %v615, 0.0
        %v1305 = vsel %vm902, %v616, 0.0
        %v1306 = vsel %vm902, %v617, 0.0
        %v1307 = vsel %vm902, %v618, 0.0
        %v1308 = vsel %vm902, %v619, 0.0
        %v1309 = vsel %vm902, %v620, 0.0
        %v1310 = vsel %vm902, %v621, 0.0
        %v1311 = vsel %vm902, %v622, 0.0
        %v1312 = vsel %vm902, %v623, 0.0
        %v1313 = vsel %vm903, %v624, 0.0
        %v1314 = vsel %vm903, %v625, 0.0
        %v1315 = vsel %vm903, %v626, 0.0
        %v1316 = vsel %vm903, %v627, 0.0
        %v1317 = vsel %vm903, %v628, 0.0
        %v1318 = vsel %vm903, %v629, 0.0
        %v1319 = vsel %vm903, %v630, 0.0
        %v1320 = vsel %vm903, %v631, 0.0
        %v1321 = vsel %vm903, %v632, 0.0
        %v1322 = vsel %vm903, %v633, 0.0
        %v1323 = vsel %vm903, %v634, 0.0
        %v1324 = vsel %vm903, %v635, 0.0
        %v1325 = vsel %vm904, %v636, 0.0
        %v1326 = vsel %vm904, %v637, 0.0
        %v1327 = vsel %vm904, %v638, 0.0
        %v1328 = vsel %vm904, %v639, 0.0
        %v1329 = vsel %vm904, %v640, 0.0
        %v1330 = vsel %vm904, %v641, 0.0
        %v1331 = vsel %vm904, %v642, 0.0
        %v1332 = vsel %vm904, %v643, 0.0
        %v1333 = vsel %vm904, %v644, 0.0
        %v1334 = vsel %vm904, %v645, 0.0
        %v1335 = vsel %vm904, %v646, 0.0
        %v1336 = vsel %vm904, %v647, 0.0
        %p1337 = scmp.eq.s32.totalorder %s19, 0
        // Predicated region
        $region25: #{threhook_layer_pallas.1} parent=23 // pred_check
          %p1338 = pneg %p1337
        $region26: #{threhook_layer_pallas.1} parent=23 // pred_check_branch
          %1340 = sbr.rel (%p1338) target = $region28
        $region27: #{threhook_layer_pallas.1} parent=23 // pred_region
          %1341 = vst [vmem:[#allocation2] sm:$0xff] 0.0
          %1342 = vst [vmem:[#allocation3] sm:$0xff] 0.0
          %1343 = vst [vmem:[#allocation4] sm:$0xff] 0.0
        $region28: #{threhook_layer_pallas.1} parent=23 // pred_fallthru
          _
        %v1344 = vld [vmem:[#allocation2] sm:$0xff]
        %v1345 = vmax.f32 %v1121, %v1125
        %v1346 = vmax.f32 %v1122, %v1126
        %v1347 = vmax.f32 %v1123, %v1127
        %v1348 = vmax.f32 %v1124, %v1128
        %v1349 = vmax.f32 %v1345, %v1129
        %v1350 = vmax.f32 %v1346, %v1130
        %v1351 = vmax.f32 %v1347, %v1131
        %v1352 = vsel %vm659, %v1132, -inf
        %v1353 = vmax.f32 %v1348, %v1352
        %v1354 = vmax.f32 %v1349, %v1133
        %v1355 = vmax.f32 %v1350, %v1134
        %v1356 = vmax.f32 %v1351, %v1135
        %v1357 = vmax.f32 %v1353, %v1136
        %v1358 = vmax.f32 %v1354, %v1137
        %v1359 = vmax.f32 %v1355, %v1138
        %v1360 = vmax.f32 %v1356, %v1139
        %v1361 = vmax.f32 %v1357, %v1140
        %v1362 = vmax.f32 %v1358, %v1141
        %v1363 = vmax.f32 %v1359, %v1142
        %v1364 = vmax.f32 %v1360, %v1143
        %v1365 = vsel %vm659, %v1144, -inf
        %v1366 = vmax.f32 %v1361, %v1365
        %v1367 = vmax.f32 %v1362, %v1145
        %v1368 = vmax.f32 %v1363, %v1146
        %v1369 = vmax.f32 %v1364, %v1147
        %v1370 = vmax.f32 %v1366, %v1148
        %v1371 = vmax.f32 %v1367, %v1149
        %v1372 = vmax.f32 %v1368, %v1150
        %v1373 = vmax.f32 %v1369, %v1151
        %v1374 = vmax.f32 %v1370, %v1152
        %v1375 = vmax.f32 %v1371, %v1153
        %v1376 = vmax.f32 %v1372, %v1154
        %v1377 = vmax.f32 %v1373, %v1155
        %v1378 = vsel %vm659, %v1156, -inf
        %v1379 = vmax.f32 %v1374, %v1378
        %v1380 = vmax.f32 %v1375, %v1157
        %v1381 = vmax.f32 %v1376, %v1158
        %v1382 = vmax.f32 %v1377, %v1159
        %v1383 = vmax.f32 %v1379, %v1160
        %v1384 = vmax.f32 %v1380, %v1161
        %v1385 = vmax.f32 %v1381, %v1162
        %v1386 = vmax.f32 %v1382, %v1163
        %v1387 = vmax.f32 %v1383, %v1164
        %v1388 = vmax.f32 %v1384, %v1165
        %v1389 = vmax.f32 %v1385, %v1166
        %v1390 = vmax.f32 %v1386, %v1167
        %v1391 = vsel %vm659, %v1168, -inf
        %v1392 = vmax.f32 %v1387, %v1391
        %v1393 = vmax.f32 %v1388, %v1169
        %v1394 = vmax.f32 %v1389, %v1170
        %v1395 = vmax.f32 %v1390, %v1171
        %v1396 = vmax.f32 %v1392, %v1172
        %v1397 = vmax.f32 %v1393, %v1173
        %v1398 = vmax.f32 %v1394, %v1174
        %v1399 = vmax.f32 %v1395, %v1175
        %v1400 = vmax.f32 %v1396, %v1176
        %v1401 = vmax.f32 %v1397, %v1177
        %v1402 = vmax.f32 %v1398, %v1178
        %v1403 = vmax.f32 %v1399, %v1179
        %v1404 = vsel %vm659, %v1180, -inf
        %v1405 = vmax.f32 %v1400, %v1404
        %v1406 = vmax.f32 %v1401, %v1181
        %v1407 = vmax.f32 %v1402, %v1182
        %v1408 = vmax.f32 %v1403, %v1183
        %v1409 = vmax.f32 %v1405, %v1184
        %v1410 = vmax.f32 %v1406, %v1185
        %v1411 = vmax.f32 %v1407, %v1186
        %v1412 = vmax.f32 %v1408, %v1187
        %v1413 = vmax.f32 %v1409, %v1188
        %v1414 = vmax.f32 %v1410, %v1189
        %v1415 = vmax.f32 %v1411, %v1190
        %v1416 = vmax.f32 %v1412, %v1191
        %v1417 = vsel %vm659, %v1192, -inf
        %v1418 = vmax.f32 %v1413, %v1417
        %v1419 = vmax.f32 %v1414, %v1193
        %v1420 = vmax.f32 %v1415, %v1194
        %v1421 = vmax.f32 %v1416, %v1195
        %v1422 = vmax.f32 %v1418, %v1196
        %v1423 = vmax.f32 %v1419, %v1197
        %v1424 = vmax.f32 %v1420, %v1198
        %v1425 = vmax.f32 %v1421, %v1199
        %v1426 = vmax.f32 %v1422, %v1200
        %v1427 = vmax.f32 %v1423, %v1201
        %v1428 = vmax.f32 %v1424, %v1202
        %v1429 = vmax.f32 %v1425, %v1203
        %v1430 = vsel %vm659, %v1204, -inf
        %v1431 = vmax.f32 %v1426, %v1430
        %v1432 = vmax.f32 %v1427, %v1205
        %v1433 = vmax.f32 %v1428, %v1206
        %v1434 = vmax.f32 %v1429, %v1207
        %v1435 = vmax.f32 %v1431, %v1208
        %v1436 = vmax.f32 %v1432, %v1209
        %v1437 = vmax.f32 %v1433, %v1210
        %v1438 = vmax.f32 %v1434, %v1211
        %v1439 = vmax.f32 %v1435, %v1212
        %v1440 = vmax.f32 %v1436, %v1213
        %v1441 = vmax.f32 %v1437, %v1214
        %v1442 = vmax.f32 %v1438, %v1215
        %v1443 = vsel %vm659, %v1216, -inf
        %v1444 = vmax.f32 %v1439, %v1443
        %v1445 = vmax.f32 %v1440, %v1217
        %v1446 = vmax.f32 %v1441, %v1218
        %v1447 = vmax.f32 %v1442, %v1219
        %v1448 = vmax.f32 %v1444, %v1220
        %v1449 = vmax.f32 %v1445, %v1221
        %v1450 = vmax.f32 %v1446, %v1222
        %v1451 = vmax.f32 %v1447, %v1223
        %v1452 = vmax.f32 %v1448, %v1224
        %v1453 = vmax.f32 %v1449, %v1225
        %v1454 = vmax.f32 %v1450, %v1226
        %v1455 = vmax.f32 %v1451, %v1227
        %v1456 = vsel %vm659, %v1228, -inf
        %v1457 = vmax.f32 %v1452, %v1456
        %v1458 = vmax.f32 %v1453, %v1229
        %v1459 = vmax.f32 %v1454, %v1230
        %v1460 = vmax.f32 %v1455, %v1231
        %v1461 = vmax.f32 %v1457, %v1232
        %v1462 = vmax.f32 %v1458, %v1233
        %v1463 = vmax.f32 %v1459, %v1234
        %v1464 = vmax.f32 %v1460, %v1235
        %v1465 = vmax.f32 %v1461, %v1236
        %v1466 = vmax.f32 %v1462, %v1237
        %v1467 = vmax.f32 %v1463, %v1238
        %v1468 = vmax.f32 %v1464, %v1239
        %v1469 = vsel %vm659, %v1240, -inf
        %v1470 = vmax.f32 %v1465, %v1469
        %v1471 = vmax.f32 %v1466, %v1241
        %v1472 = vmax.f32 %v1467, %v1242
        %v1473 = vmax.f32 %v1468, %v1243
        %v1474 = vmax.f32 %v1470, %v1244
        %v1475 = vmax.f32 %v1471, %v1245
        %v1476 = vmax.f32 %v1472, %v1246
        %v1477 = vmax.f32 %v1473, %v1247
        %v1478 = vmax.f32 %v1474, %v1248
        %v1479 = vmax.f32 %v1475, %v1249
        %v1480 = vmax.f32 %v1476, %v1250
        %v1481 = vmax.f32 %v1477, %v1251
        %v1482 = vsel %vm659, %v1252, -inf
        %v1483 = vmax.f32 %v1478, %v1482
        %v1484 = vmax.f32 %v1479, %v1253
        %v1485 = vmax.f32 %v1480, %v1254
        %v1486 = vmax.f32 %v1481, %v1255
        %v1487 = vmax.f32 %v1483, %v1256
        %v1488 = vmax.f32 %v1484, %v1257
        %v1489 = vmax.f32 %v1485, %v1258
        %v1490 = vmax.f32 %v1486, %v1259
        %v1491 = vmax.f32 %v1487, %v1260
        %v1492 = vmax.f32 %v1488, %v1261
        %v1493 = vmax.f32 %v1489, %v1262
        %v1494 = vmax.f32 %v1490, %v1263
        %v1495 = vsel %vm659, %v1264, -inf
        %v1496 = vmax.f32 %v1491, %v1495
        %v1497 = vmax.f32 %v1492, %v1265
        %v1498 = vmax.f32 %v1493, %v1266
        %v1499 = vmax.f32 %v1494, %v1267
        %v1500 = vmax.f32 %v1496, %v1268
        %v1501 = vmax.f32 %v1497, %v1269
        %v1502 = vmax.f32 %v1498, %v1270
        %v1503 = vmax.f32 %v1499, %v1271
        %v1504 = vmax.f32 %v1500, %v1272
        %v1505 = vmax.f32 %v1501, %v1273
        %v1506 = vmax.f32 %v1502, %v1274
        %v1507 = vmax.f32 %v1503, %v1275
        %v1508 = vsel %vm659, %v1276, -inf
        %v1509 = vmax.f32 %v1504, %v1508
        %v1510 = vmax.f32 %v1505, %v1277
        %v1511 = vmax.f32 %v1506, %v1278
        %v1512 = vmax.f32 %v1507, %v1279
        %v1513 = vmax.f32 %v1509, %v1280
        %v1514 = vmax.f32 %v1510, %v1281
        %v1515 = vmax.f32 %v1511, %v1282
        %v1516 = vmax.f32 %v1512, %v1283
        %v1517 = vmax.f32 %v1513, %v1284
        %v1518 = vmax.f32 %v1514, %v1285
        %v1519 = vmax.f32 %v1515, %v1286
        %v1520 = vmax.f32 %v1516, %v1287
        %v1521 = vsel %vm659, %v1288, -inf
        %v1522 = vmax.f32 %v1517, %v1521
        %v1523 = vmax.f32 %v1518, %v1289
        %v1524 = vmax.f32 %v1519, %v1290
        %v1525 = vmax.f32 %v1520, %v1291
        %v1526 = vmax.f32 %v1522, %v1292
        %v1527 = vmax.f32 %v1523, %v1293
        %v1528 = vmax.f32 %v1524, %v1294
        %v1529 = vmax.f32 %v1525, %v1295
        %v1530 = vmax.f32 %v1526, %v1296
        %v1531 = vmax.f32 %v1527, %v1297
        %v1532 = vmax.f32 %v1528, %v1298
        %v1533 = vmax.f32 %v1529, %v1299
        %v1534 = vsel %vm659, %v1300, -inf
        %v1535 = vmax.f32 %v1530, %v1534
        %v1536 = vmax.f32 %v1531, %v1301
        %v1537 = vmax.f32 %v1532, %v1302
        %v1538 = vmax.f32 %v1533, %v1303
        %v1539 = vmax.f32 %v1535, %v1304
        %v1540 = vmax.f32 %v1536, %v1305
        %v1541 = vmax.f32 %v1537, %v1306
        %v1542 = vmax.f32 %v1538, %v1307
        %v1543 = vmax.f32 %v1539, %v1308
        %v1544 = vmax.f32 %v1540, %v1309
        %v1545 = vmax.f32 %v1541, %v1310
        %v1546 = vmax.f32 %v1542, %v1311
        %v1547 = vsel %vm659, %v1312, -inf
        %v1548 = vmax.f32 %v1543, %v1547
        %v1549 = vmax.f32 %v1544, %v1313
        %v1550 = vmax.f32 %v1545, %v1314
        %v1551 = vmax.f32 %v1546, %v1315
        %v1552 = vmax.f32 %v1548, %v1316
        %v1553 = vmax.f32 %v1549, %v1317
        %v1554 = vmax.f32 %v1550, %v1318
        %v1555 = vmax.f32 %v1551, %v1319
        %v1556 = vmax.f32 %v1552, %v1320
        %v1557 = vmax.f32 %v1553, %v1321
        %v1558 = vmax.f32 %v1554, %v1322
        %v1559 = vmax.f32 %v1555, %v1323
        %v1560 = vsel %vm659, %v1324, -inf
        %v1561 = vmax.f32 %v1556, %v1560
        %v1562 = vmax.f32 %v1557, %v1325
        %v1563 = vmax.f32 %v1558, %v1326
        %v1564 = vmax.f32 %v1559, %v1327
        %v1565 = vmax.f32 %v1561, %v1328
        %v1566 = vmax.f32 %v1562, %v1329
        %v1567 = vmax.f32 %v1563, %v1330
        %v1568 = vmax.f32 %v1564, %v1331
        %v1569 = vmax.f32 %v1565, %v1332
        %v1570 = vmax.f32 %v1566, %v1333
        %v1571 = vmax.f32 %v1567, %v1334
        %v1572 = vmax.f32 %v1568, %v1335
        %v1573 = vsel %vm659, %v1336, -inf
        %v1574 = vmax.f32 %v1569, %v1573
        %v1575 = vmax.f32 %v1570, %v1571
        %v1576 = vmax.f32 %v1572, %v1574
        %v1577 = vmax.f32 %v1575, %v1576
        %1578 = vmax.xlane.f32.xlu0 %v1577
        %v1579 = vpop.xlane.xlu0 %1578
        %v1580 = vrot.slane %v1579, 4
        %v1581 = vmax.f32 %v1579, %v1580
        %v1582 = vrot.slane %v1581, 2
        %v1583 = vmax.f32 %v1581, %v1582
        %v1584 = vrot.slane %v1583, 1
        %v1585 = vmax.f32 %v1583, %v1584
        %s1586 = vtos %v1585
        %v1587 = vstv %s1586
        %v1588 = vmax.f32 %v1344, %v1587
        %1589 = vst [vmem:[#allocation2] sm:$0xff] %v1588
        %v1590 = vld [vmem:[#allocation3] sm:$0xff]
        %v1591 = vadd.f32 %v905, %v906
        %v1592 = vadd.f32 %v1591, %v907
        %v1593 = vadd.f32 %v1592, %v908
        %v1594 = vadd.f32 %v1593, %v909
        %v1595 = vadd.f32 %v1594, %v910
        %v1596 = vadd.f32 %v1595, %v911
        %v1597 = vadd.f32 %v1596, %v912
        %v1598 = vadd.f32 %v1597, %v913
        %v1599 = vadd.f32 %v1598, %v914
        %v1600 = vadd.f32 %v1599, %v915
        %v1601 = vsel %vm659, %v916, 0.0
        %v1602 = vadd.f32 %v1600, %v1601
        %v1603 = vadd.f32 %v1602, %v917
        %v1604 = vadd.f32 %v1603, %v918
        %v1605 = vadd.f32 %v1604, %v919
        %v1606 = vadd.f32 %v1605, %v920
        %v1607 = vadd.f32 %v1606, %v921
        %v1608 = vadd.f32 %v1607, %v922
        %v1609 = vadd.f32 %v1608, %v923
        %v1610 = vadd.f32 %v1609, %v924
        %v1611 = vadd.f32 %v1610, %v925
        %v1612 = vadd.f32 %v1611, %v926
        %v1613 = vadd.f32 %v1612, %v927
        %v1614 = vsel %vm659, %v928, 0.0
        %v1615 = vadd.f32 %v1613, %v1614
        %v1616 = vadd.f32 %v1615, %v929
        %v1617 = vadd.f32 %v1616, %v930
        %v1618 = vadd.f32 %v1617, %v931
        %v1619 = vadd.f32 %v1618, %v932
        %v1620 = vadd.f32 %v1619, %v933
        %v1621 = vadd.f32 %v1620, %v934
        %v1622 = vadd.f32 %v1621, %v935
        %v1623 = vadd.f32 %v1622, %v936
        %v1624 = vadd.f32 %v1623, %v937
        %v1625 = vadd.f32 %v1624, %v938
        %v1626 = vadd.f32 %v1625, %v939
        %v1627 = vsel %vm659, %v940, 0.0
        %v1628 = vadd.f32 %v1626, %v1627
        %v1629 = vadd.f32 %v1628, %v941
        %v1630 = vadd.f32 %v1629, %v942
        %v1631 = vadd.f32 %v1630, %v943
        %v1632 = vadd.f32 %v1631, %v944
        %v1633 = vadd.f32 %v1632, %v945
        %v1634 = vadd.f32 %v1633, %v946
        %v1635 = vadd.f32 %v1634, %v947
        %v1636 = vadd.f32 %v1635, %v948
        %v1637 = vadd.f32 %v1636, %v949
        %v1638 = vadd.f32 %v1637, %v950
        %v1639 = vadd.f32 %v1638, %v951
        %v1640 = vsel %vm659, %v952, 0.0
        %v1641 = vadd.f32 %v1639, %v1640
        %v1642 = vadd.f32 %v1641, %v953
        %v1643 = vadd.f32 %v1642, %v954
        %v1644 = vadd.f32 %v1643, %v955
        %v1645 = vadd.f32 %v1644, %v956
        %v1646 = vadd.f32 %v1645, %v957
        %v1647 = vadd.f32 %v1646, %v958
        %v1648 = vadd.f32 %v1647, %v959
        %v1649 = vadd.f32 %v1648, %v960
        %v1650 = vadd.f32 %v1649, %v961
        %v1651 = vadd.f32 %v1650, %v962
        %v1652 = vadd.f32 %v1651, %v963
        %v1653 = vsel %vm659, %v964, 0.0
        %v1654 = vadd.f32 %v1652, %v1653
        %v1655 = vadd.f32 %v1654, %v965
        %v1656 = vadd.f32 %v1655, %v966
        %v1657 = vadd.f32 %v1656, %v967
        %v1658 = vadd.f32 %v1657, %v968
        %v1659 = vadd.f32 %v1658, %v969
        %v1660 = vadd.f32 %v1659, %v970
        %v1661 = vadd.f32 %v1660, %v971
        %v1662 = vadd.f32 %v1661, %v972
        %v1663 = vadd.f32 %v1662, %v973
        %v1664 = vadd.f32 %v1663, %v974
        %v1665 = vadd.f32 %v1664, %v975
        %v1666 = vsel %vm659, %v976, 0.0
        %v1667 = vadd.f32 %v1665, %v1666
        %v1668 = vadd.f32 %v1667, %v977
        %v1669 = vadd.f32 %v1668, %v978
        %v1670 = vadd.f32 %v1669, %v979
        %v1671 = vadd.f32 %v1670, %v980
        %v1672 = vadd.f32 %v1671, %v981
        %v1673 = vadd.f32 %v1672, %v982
        %v1674 = vadd.f32 %v1673, %v983
        %v1675 = vadd.f32 %v1674, %v984
        %v1676 = vadd.f32 %v1675, %v985
        %v1677 = vadd.f32 %v1676, %v986
        %v1678 = vadd.f32 %v1677, %v987
        %v1679 = vsel %vm659, %v988, 0.0
        %v1680 = vadd.f32 %v1678, %v1679
        %v1681 = vadd.f32 %v1680, %v989
        %v1682 = vadd.f32 %v1681, %v990
        %v1683 = vadd.f32 %v1682, %v991
        %v1684 = vadd.f32 %v1683, %v992
        %v1685 = vadd.f32 %v1684, %v993
        %v1686 = vadd.f32 %v1685, %v994
        %v1687 = vadd.f32 %v1686, %v995
        %v1688 = vadd.f32 %v1687, %v996
        %v1689 = vadd.f32 %v1688, %v997
        %v1690 = vadd.f32 %v1689, %v998
        %v1691 = vadd.f32 %v1690, %v999
        %v1692 = vsel %vm659, %v1000, 0.0
        %v1693 = vadd.f32 %v1691, %v1692
        %v1694 = vadd.f32 %v1693, %v1001
        %v1695 = vadd.f32 %v1694, %v1002
        %v1696 = vadd.f32 %v1695, %v1003
        %v1697 = vadd.f32 %v1696, %v1004
        %v1698 = vadd.f32 %v1697, %v1005
        %v1699 = vadd.f32 %v1698, %v1006
        %v1700 = vadd.f32 %v1699, %v1007
        %v1701 = vadd.f32 %v1700, %v1008
        %v1702 = vadd.f32 %v1701, %v1009
        %v1703 = vadd.f32 %v1702, %v1010
        %v1704 = vadd.f32 %v1703, %v1011
        %v1705 = vsel %vm659, %v1012, 0.0
        %v1706 = vadd.f32 %v1704, %v1705
        %v1707 = vadd.f32 %v1706, %v1013
        %v1708 = vadd.f32 %v1707, %v1014
        %v1709 = vadd.f32 %v1708, %v1015
        %v1710 = vadd.f32 %v1709, %v1016
        %v1711 = vadd.f32 %v1710, %v1017
        %v1712 = vadd.f32 %v1711, %v1018
        %v1713 = vadd.f32 %v1712, %v1019
        %v1714 = vadd.f32 %v1713, %v1020
        %v1715 = vadd.f32 %v1714, %v1021
        %v1716 = vadd.f32 %v1715, %v1022
        %v1717 = vadd.f32 %v1716, %v1023
        %v1718 = vsel %vm659, %v1024, 0.0
        %v1719 = vadd.f32 %v1717, %v1718
        %v1720 = vadd.f32 %v1719, %v1025
        %v1721 = vadd.f32 %v1720, %v1026
        %v1722 = vadd.f32 %v1721, %v1027
        %v1723 = vadd.f32 %v1722, %v1028
        %v1724 = vadd.f32 %v1723, %v1029
        %v1725 = vadd.f32 %v1724, %v1030
        %v1726 = vadd.f32 %v1725, %v1031
        %v1727 = vadd.f32 %v1726, %v1032
        %v1728 = vadd.f32 %v1727, %v1033
        %v1729 = vadd.f32 %v1728, %v1034
        %v1730 = vadd.f32 %v1729, %v1035
        %v1731 = vsel %vm659, %v1036, 0.0
        %v1732 = vadd.f32 %v1730, %v1731
        %v1733 = vadd.f32 %v1732, %v1037
        %v1734 = vadd.f32 %v1733, %v1038
        %v1735 = vadd.f32 %v1734, %v1039
        %v1736 = vadd.f32 %v1735, %v1040
        %v1737 = vadd.f32 %v1736, %v1041
        %v1738 = vadd.f32 %v1737, %v1042
        %v1739 = vadd.f32 %v1738, %v1043
        %v1740 = vadd.f32 %v1739, %v1044
        %v1741 = vadd.f32 %v1740, %v1045
        %v1742 = vadd.f32 %v1741, %v1046
        %v1743 = vadd.f32 %v1742, %v1047
        %v1744 = vsel %vm659, %v1048, 0.0
        %v1745 = vadd.f32 %v1743, %v1744
        %v1746 = vadd.f32 %v1745, %v1049
        %v1747 = vadd.f32 %v1746, %v1050
        %v1748 = vadd.f32 %v1747, %v1051
        %v1749 = vadd.f32 %v1748, %v1052
        %v1750 = vadd.f32 %v1749, %v1053
        %v1751 = vadd.f32 %v1750, %v1054
        %v1752 = vadd.f32 %v1751, %v1055
        %v1753 = vadd.f32 %v1752, %v1056
        %v1754 = vadd.f32 %v1753, %v1057
        %v1755 = vadd.f32 %v1754, %v1058
        %v1756 = vadd.f32 %v1755, %v1059
        %v1757 = vsel %vm659, %v1060, 0.0
        %v1758 = vadd.f32 %v1756, %v1757
        %v1759 = vadd.f32 %v1758, %v1061
        %v1760 = vadd.f32 %v1759, %v1062
        %v1761 = vadd.f32 %v1760, %v1063
        %v1762 = vadd.f32 %v1761, %v1064
        %v1763 = vadd.f32 %v1762, %v1065
        %v1764 = vadd.f32 %v1763, %v1066
        %v1765 = vadd.f32 %v1764, %v1067
        %v1766 = vadd.f32 %v1765, %v1068
        %v1767 = vadd.f32 %v1766, %v1069
        %v1768 = vadd.f32 %v1767, %v1070
        %v1769 = vadd.f32 %v1768, %v1071
        %v1770 = vsel %vm659, %v1072, 0.0
        %v1771 = vadd.f32 %v1769, %v1770
        %v1772 = vadd.f32 %v1771, %v1073
        %v1773 = vadd.f32 %v1772, %v1074
        %v1774 = vadd.f32 %v1773, %v1075
        %v1775 = vadd.f32 %v1774, %v1076
        %v1776 = vadd.f32 %v1775, %v1077
        %v1777 = vadd.f32 %v1776, %v1078
        %v1778 = vadd.f32 %v1777, %v1079
        %v1779 = vadd.f32 %v1778, %v1080
        %v1780 = vadd.f32 %v1779, %v1081
        %v1781 = vadd.f32 %v1780, %v1082
        %v1782 = vadd.f32 %v1781, %v1083
        %v1783 = vsel %vm659, %v1084, 0.0
        %v1784 = vadd.f32 %v1782, %v1783
        %v1785 = vadd.f32 %v1784, %v1085
        %v1786 = vadd.f32 %v1785, %v1086
        %v1787 = vadd.f32 %v1786, %v1087
        %v1788 = vadd.f32 %v1787, %v1088
        %v1789 = vadd.f32 %v1788, %v1089
        %v1790 = vadd.f32 %v1789, %v1090
        %v1791 = vadd.f32 %v1790, %v1091
        %v1792 = vadd.f32 %v1791, %v1092
        %v1793 = vadd.f32 %v1792, %v1093
        %v1794 = vadd.f32 %v1793, %v1094
        %v1795 = vadd.f32 %v1794, %v1095
        %v1796 = vsel %vm659, %v1096, 0.0
        %v1797 = vadd.f32 %v1795, %v1796
        %v1798 = vadd.f32 %v1797, %v1097
        %v1799 = vadd.f32 %v1798, %v1098
        %v1800 = vadd.f32 %v1799, %v1099
        %v1801 = vadd.f32 %v1800, %v1100
        %v1802 = vadd.f32 %v1801, %v1101
        %v1803 = vadd.f32 %v1802, %v1102
        %v1804 = vadd.f32 %v1803, %v1103
        %v1805 = vadd.f32 %v1804, %v1104
        %v1806 = vadd.f32 %v1805, %v1105
        %v1807 = vadd.f32 %v1806, %v1106
        %v1808 = vadd.f32 %v1807, %v1107
        %v1809 = vsel %vm659, %v1108, 0.0
        %v1810 = vadd.f32 %v1808, %v1809
        %v1811 = vadd.f32 %v1810, %v1109
        %v1812 = vadd.f32 %v1811, %v1110
        %v1813 = vadd.f32 %v1812, %v1111
        %v1814 = vadd.f32 %v1813, %v1112
        %v1815 = vadd.f32 %v1814, %v1113
        %v1816 = vadd.f32 %v1815, %v1114
        %v1817 = vadd.f32 %v1816, %v1115
        %v1818 = vadd.f32 %v1817, %v1116
        %v1819 = vadd.f32 %v1818, %v1117
        %v1820 = vadd.f32 %v1819, %v1118
        %v1821 = vadd.f32 %v1820, %v1119
        %v1822 = vsel %vm659, %v1120, 0.0
        %v1823 = vadd.f32 %v1821, %v1822
        %1824 = vadd.xlane.f32.xlu0 %v1823
        %v1825 = vpop.xlane.xlu0 %1824
        %v1826 = vrot.slane %v1825, 4
        %v1827 = vadd.f32 %v1825, %v1826
        %v1828 = vrot.slane %v1827, 2
        %v1829 = vadd.f32 %v1827, %v1828
        %v1830 = vrot.slane %v1829, 1
        %v1831 = vadd.f32 %v1829, %v1830
        %s1832 = vtos %v1831
        %v1833 = vstv %s1832
        %v1834 = vadd.f32 %v1590, %v1833
        %1835 = vst [vmem:[#allocation3] sm:$0xff] %v1834
        %v1836 = vld [vmem:[#allocation4] sm:$0xff]
        %v1837 = vmul.f32 %v905, %v905
        %v1838 = vmul.f32 %v906, %v906
        %v1839 = vmul.f32 %v907, %v907
        %v1840 = vmul.f32 %v908, %v908
        %v1841 = vmul.f32 %v909, %v909
        %v1842 = vmul.f32 %v910, %v910
        %v1843 = vmul.f32 %v911, %v911
        %v1844 = vmul.f32 %v912, %v912
        %v1845 = vmul.f32 %v913, %v913
        %v1846 = vmul.f32 %v914, %v914
        %v1847 = vmul.f32 %v915, %v915
        %v1848 = vmul.f32 %v916, %v916
        %v1849 = vmul.f32 %v917, %v917
        %v1850 = vmul.f32 %v918, %v918
        %v1851 = vmul.f32 %v919, %v919
        %v1852 = vmul.f32 %v920, %v920
        %v1853 = vmul.f32 %v921, %v921
        %v1854 = vmul.f32 %v922, %v922
        %v1855 = vmul.f32 %v923, %v923
        %v1856 = vmul.f32 %v924, %v924
        %v1857 = vmul.f32 %v925, %v925
        %v1858 = vmul.f32 %v926, %v926
        %v1859 = vmul.f32 %v927, %v927
        %v1860 = vmul.f32 %v928, %v928
        %v1861 = vmul.f32 %v929, %v929
        %v1862 = vmul.f32 %v930, %v930
        %v1863 = vmul.f32 %v931, %v931
        %v1864 = vmul.f32 %v932, %v932
        %v1865 = vmul.f32 %v933, %v933
        %v1866 = vmul.f32 %v934, %v934
        %v1867 = vmul.f32 %v935, %v935
        %v1868 = vmul.f32 %v936, %v936
        %v1869 = vmul.f32 %v937, %v937
        %v1870 = vmul.f32 %v938, %v938
        %v1871 = vmul.f32 %v939, %v939
        %v1872 = vmul.f32 %v940, %v940
        %v1873 = vmul.f32 %v941, %v941
        %v1874 = vmul.f32 %v942, %v942
        %v1875 = vmul.f32 %v943, %v943
        %v1876 = vmul.f32 %v944, %v944
        %v1877 = vmul.f32 %v945, %v945
        %v1878 = vmul.f32 %v946, %v946
        %v1879 = vmul.f32 %v947, %v947
        %v1880 = vmul.f32 %v948, %v948
        %v1881 = vmul.f32 %v949, %v949
        %v1882 = vmul.f32 %v950, %v950
        %v1883 = vmul.f32 %v951, %v951
        %v1884 = vmul.f32 %v952, %v952
        %v1885 = vmul.f32 %v953, %v953
        %v1886 = vmul.f32 %v954, %v954
        %v1887 = vmul.f32 %v955, %v955
        %v1888 = vmul.f32 %v956, %v956
        %v1889 = vmul.f32 %v957, %v957
        %v1890 = vmul.f32 %v958, %v958
        %v1891 = vmul.f32 %v959, %v959
        %v1892 = vmul.f32 %v960, %v960
        %v1893 = vmul.f32 %v961, %v961
        %v1894 = vmul.f32 %v962, %v962
        %v1895 = vmul.f32 %v963, %v963
        %v1896 = vmul.f32 %v964, %v964
        %v1897 = vmul.f32 %v965, %v965
        %v1898 = vmul.f32 %v966, %v966
        %v1899 = vmul.f32 %v967, %v967
        %v1900 = vmul.f32 %v968, %v968
        %v1901 = vmul.f32 %v969, %v969
        %v1902 = vmul.f32 %v970, %v970
        %v1903 = vmul.f32 %v971, %v971
        %v1904 = vmul.f32 %v972, %v972
        %v1905 = vmul.f32 %v973, %v973
        %v1906 = vmul.f32 %v974, %v974
        %v1907 = vmul.f32 %v975, %v975
        %v1908 = vmul.f32 %v976, %v976
        %v1909 = vmul.f32 %v977, %v977
        %v1910 = vmul.f32 %v978, %v978
        %v1911 = vmul.f32 %v979, %v979
        %v1912 = vmul.f32 %v980, %v980
        %v1913 = vmul.f32 %v981, %v981
        %v1914 = vmul.f32 %v982, %v982
        %v1915 = vmul.f32 %v983, %v983
        %v1916 = vmul.f32 %v984, %v984
        %v1917 = vmul.f32 %v985, %v985
        %v1918 = vmul.f32 %v986, %v986
        %v1919 = vmul.f32 %v987, %v987
        %v1920 = vmul.f32 %v988, %v988
        %v1921 = vmul.f32 %v989, %v989
        %v1922 = vmul.f32 %v990, %v990
        %v1923 = vmul.f32 %v991, %v991
        %v1924 = vmul.f32 %v992, %v992
        %v1925 = vmul.f32 %v993, %v993
        %v1926 = vmul.f32 %v994, %v994
        %v1927 = vmul.f32 %v995, %v995
        %v1928 = vmul.f32 %v996, %v996
        %v1929 = vmul.f32 %v997, %v997
        %v1930 = vmul.f32 %v998, %v998
        %v1931 = vmul.f32 %v999, %v999
        %v1932 = vmul.f32 %v1000, %v1000
        %v1933 = vmul.f32 %v1001, %v1001
        %v1934 = vmul.f32 %v1002, %v1002
        %v1935 = vmul.f32 %v1003, %v1003
        %v1936 = vmul.f32 %v1004, %v1004
        %v1937 = vmul.f32 %v1005, %v1005
        %v1938 = vmul.f32 %v1006, %v1006
        %v1939 = vmul.f32 %v1007, %v1007
        %v1940 = vmul.f32 %v1008, %v1008
        %v1941 = vmul.f32 %v1009, %v1009
        %v1942 = vmul.f32 %v1010, %v1010
        %v1943 = vmul.f32 %v1011, %v1011
        %v1944 = vmul.f32 %v1012, %v1012
        %v1945 = vmul.f32 %v1013, %v1013
        %v1946 = vmul.f32 %v1014, %v1014
        %v1947 = vmul.f32 %v1015, %v1015
        %v1948 = vmul.f32 %v1016, %v1016
        %v1949 = vmul.f32 %v1017, %v1017
        %v1950 = vmul.f32 %v1018, %v1018
        %v1951 = vmul.f32 %v1019, %v1019
        %v1952 = vmul.f32 %v1020, %v1020
        %v1953 = vmul.f32 %v1021, %v1021
        %v1954 = vmul.f32 %v1022, %v1022
        %v1955 = vmul.f32 %v1023, %v1023
        %v1956 = vmul.f32 %v1024, %v1024
        %v1957 = vmul.f32 %v1025, %v1025
        %v1958 = vmul.f32 %v1026, %v1026
        %v1959 = vmul.f32 %v1027, %v1027
        %v1960 = vmul.f32 %v1028, %v1028
        %v1961 = vmul.f32 %v1029, %v1029
        %v1962 = vmul.f32 %v1030, %v1030
        %v1963 = vmul.f32 %v1031, %v1031
        %v1964 = vmul.f32 %v1032, %v1032
        %v1965 = vmul.f32 %v1033, %v1033
        %v1966 = vmul.f32 %v1034, %v1034
        %v1967 = vmul.f32 %v1035, %v1035
        %v1968 = vmul.f32 %v1036, %v1036
        %v1969 = vmul.f32 %v1037, %v1037
        %v1970 = vmul.f32 %v1038, %v1038
        %v1971 = vmul.f32 %v1039, %v1039
        %v1972 = vmul.f32 %v1040, %v1040
        %v1973 = vmul.f32 %v1041, %v1041
        %v1974 = vmul.f32 %v1042, %v1042
        %v1975 = vmul.f32 %v1043, %v1043
        %v1976 = vmul.f32 %v1044, %v1044
        %v1977 = vmul.f32 %v1045, %v1045
        %v1978 = vmul.f32 %v1046, %v1046
        %v1979 = vmul.f32 %v1047, %v1047
        %v1980 = vmul.f32 %v1048, %v1048
        %v1981 = vmul.f32 %v1049, %v1049
        %v1982 = vmul.f32 %v1050, %v1050
        %v1983 = vmul.f32 %v1051, %v1051
        %v1984 = vmul.f32 %v1052, %v1052
        %v1985 = vmul.f32 %v1053, %v1053
        %v1986 = vmul.f32 %v1054, %v1054
        %v1987 = vmul.f32 %v1055, %v1055
        %v1988 = vmul.f32 %v1056, %v1056
        %v1989 = vmul.f32 %v1057, %v1057
        %v1990 = vmul.f32 %v1058, %v1058
        %v1991 = vmul.f32 %v1059, %v1059
        %v1992 = vmul.f32 %v1060, %v1060
        %v1993 = vmul.f32 %v1061, %v1061
        %v1994 = vmul.f32 %v1062, %v1062
        %v1995 = vmul.f32 %v1063, %v1063
        %v1996 = vmul.f32 %v1064, %v1064
        %v1997 = vmul.f32 %v1065, %v1065
        %v1998 = vmul.f32 %v1066, %v1066
        %v1999 = vmul.f32 %v1067, %v1067
        %v2000 = vmul.f32 %v1068, %v1068
        %v2001 = vmul.f32 %v1069, %v1069
        %v2002 = vmul.f32 %v1070, %v1070
        %v2003 = vmul.f32 %v1071, %v1071
        %v2004 = vmul.f32 %v1072, %v1072
        %v2005 = vmul.f32 %v1073, %v1073
        %v2006 = vmul.f32 %v1074, %v1074
        %v2007 = vmul.f32 %v1075, %v1075
        %v2008 = vmul.f32 %v1076, %v1076
        %v2009 = vmul.f32 %v1077, %v1077
        %v2010 = vmul.f32 %v1078, %v1078
        %v2011 = vmul.f32 %v1079, %v1079
        %v2012 = vmul.f32 %v1080, %v1080
        %v2013 = vmul.f32 %v1081, %v1081
        %v2014 = vmul.f32 %v1082, %v1082
        %v2015 = vmul.f32 %v1083, %v1083
        %v2016 = vmul.f32 %v1084, %v1084
        %v2017 = vmul.f32 %v1085, %v1085
        %v2018 = vmul.f32 %v1086, %v1086
        %v2019 = vmul.f32 %v1087, %v1087
        %v2020 = vmul.f32 %v1088, %v1088
        %v2021 = vmul.f32 %v1089, %v1089
        %v2022 = vmul.f32 %v1090, %v1090
        %v2023 = vmul.f32 %v1091, %v1091
        %v2024 = vmul.f32 %v1092, %v1092
        %v2025 = vmul.f32 %v1093, %v1093
        %v2026 = vmul.f32 %v1094, %v1094
        %v2027 = vmul.f32 %v1095, %v1095
        %v2028 = vmul.f32 %v1096, %v1096
        %v2029 = vmul.f32 %v1097, %v1097
        %v2030 = vmul.f32 %v1098, %v1098
        %v2031 = vmul.f32 %v1099, %v1099
        %v2032 = vmul.f32 %v1100, %v1100
        %v2033 = vmul.f32 %v1101, %v1101
        %v2034 = vmul.f32 %v1102, %v1102
        %v2035 = vmul.f32 %v1103, %v1103
        %v2036 = vmul.f32 %v1104, %v1104
        %v2037 = vmul.f32 %v1105, %v1105
        %v2038 = vmul.f32 %v1106, %v1106
        %v2039 = vmul.f32 %v1107, %v1107
        %v2040 = vmul.f32 %v1108, %v1108
        %v2041 = vmul.f32 %v1109, %v1109
        %v2042 = vmul.f32 %v1110, %v1110
        %v2043 = vmul.f32 %v1111, %v1111
        %v2044 = vmul.f32 %v1112, %v1112
        %v2045 = vmul.f32 %v1113, %v1113
        %v2046 = vmul.f32 %v1114, %v1114
        %v2047 = vmul.f32 %v1115, %v1115
        %v2048 = vmul.f32 %v1116, %v1116
        %v2049 = vmul.f32 %v1117, %v1117
        %v2050 = vmul.f32 %v1118, %v1118
        %v2051 = vmul.f32 %v1119, %v1119
        %v2052 = vmul.f32 %v1120, %v1120
        %v2053 = vadd.f32 %v1837, %v1838
        %v2054 = vadd.f32 %v2053, %v1839
        %v2055 = vadd.f32 %v2054, %v1840
        %v2056 = vadd.f32 %v2055, %v1841
        %v2057 = vadd.f32 %v2056, %v1842
        %v2058 = vadd.f32 %v2057, %v1843
        %v2059 = vadd.f32 %v2058, %v1844
        %v2060 = vadd.f32 %v2059, %v1845
        %v2061 = vadd.f32 %v2060, %v1846
        %v2062 = vadd.f32 %v2061, %v1847
        %v2063 = vsel %vm659, %v1848, 0.0
        %v2064 = vadd.f32 %v2062, %v2063
        %v2065 = vadd.f32 %v2064, %v1849
        %v2066 = vadd.f32 %v2065, %v1850
        %v2067 = vadd.f32 %v2066, %v1851
        %v2068 = vadd.f32 %v2067, %v1852
        %v2069 = vadd.f32 %v2068, %v1853
        %v2070 = vadd.f32 %v2069, %v1854
        %v2071 = vadd.f32 %v2070, %v1855
        %v2072 = vadd.f32 %v2071, %v1856
        %v2073 = vadd.f32 %v2072, %v1857
        %v2074 = vadd.f32 %v2073, %v1858
        %v2075 = vadd.f32 %v2074, %v1859
        %v2076 = vsel %vm659, %v1860, 0.0
        %v2077 = vadd.f32 %v2075, %v2076
        %v2078 = vadd.f32 %v2077, %v1861
        %v2079 = vadd.f32 %v2078, %v1862
        %v2080 = vadd.f32 %v2079, %v1863
        %v2081 = vadd.f32 %v2080, %v1864
        %v2082 = vadd.f32 %v2081, %v1865
        %v2083 = vadd.f32 %v2082, %v1866
        %v2084 = vadd.f32 %v2083, %v1867
        %v2085 = vadd.f32 %v2084, %v1868
        %v2086 = vadd.f32 %v2085, %v1869
        %v2087 = vadd.f32 %v2086, %v1870
        %v2088 = vadd.f32 %v2087, %v1871
        %v2089 = vsel %vm659, %v1872, 0.0
        %v2090 = vadd.f32 %v2088, %v2089
        %v2091 = vadd.f32 %v2090, %v1873
        %v2092 = vadd.f32 %v2091, %v1874
        %v2093 = vadd.f32 %v2092, %v1875
        %v2094 = vadd.f32 %v2093, %v1876
        %v2095 = vadd.f32 %v2094, %v1877
        %v2096 = vadd.f32 %v2095, %v1878
        %v2097 = vadd.f32 %v2096, %v1879
        %v2098 = vadd.f32 %v2097, %v1880
        %v2099 = vadd.f32 %v2098, %v1881
        %v2100 = vadd.f32 %v2099, %v1882
        %v2101 = vadd.f32 %v2100, %v1883
        %v2102 = vsel %vm659, %v1884, 0.0
        %v2103 = vadd.f32 %v2101, %v2102
        %v2104 = vadd.f32 %v2103, %v1885
        %v2105 = vadd.f32 %v2104, %v1886
        %v2106 = vadd.f32 %v2105, %v1887
        %v2107 = vadd.f32 %v2106, %v1888
        %v2108 = vadd.f32 %v2107, %v1889
        %v2109 = vadd.f32 %v2108, %v1890
        %v2110 = vadd.f32 %v2109, %v1891
        %v2111 = vadd.f32 %v2110, %v1892
        %v2112 = vadd.f32 %v2111, %v1893
        %v2113 = vadd.f32 %v2112, %v1894
        %v2114 = vadd.f32 %v2113, %v1895
        %v2115 = vsel %vm659, %v1896, 0.0
        %v2116 = vadd.f32 %v2114, %v2115
        %v2117 = vadd.f32 %v2116, %v1897
        %v2118 = vadd.f32 %v2117, %v1898
        %v2119 = vadd.f32 %v2118, %v1899
        %v2120 = vadd.f32 %v2119, %v1900
        %v2121 = vadd.f32 %v2120, %v1901
        %v2122 = vadd.f32 %v2121, %v1902
        %v2123 = vadd.f32 %v2122, %v1903
        %v2124 = vadd.f32 %v2123, %v1904
        %v2125 = vadd.f32 %v2124, %v1905
        %v2126 = vadd.f32 %v2125, %v1906
        %v2127 = vadd.f32 %v2126, %v1907
        %v2128 = vsel %vm659, %v1908, 0.0
        %v2129 = vadd.f32 %v2127, %v2128
        %v2130 = vadd.f32 %v2129, %v1909
        %v2131 = vadd.f32 %v2130, %v1910
        %v2132 = vadd.f32 %v2131, %v1911
        %v2133 = vadd.f32 %v2132, %v1912
        %v2134 = vadd.f32 %v2133, %v1913
        %v2135 = vadd.f32 %v2134, %v1914
        %v2136 = vadd.f32 %v2135, %v1915
        %v2137 = vadd.f32 %v2136, %v1916
        %v2138 = vadd.f32 %v2137, %v1917
        %v2139 = vadd.f32 %v2138, %v1918
        %v2140 = vadd.f32 %v2139, %v1919
        %v2141 = vsel %vm659, %v1920, 0.0
        %v2142 = vadd.f32 %v2140, %v2141
        %v2143 = vadd.f32 %v2142, %v1921
        %v2144 = vadd.f32 %v2143, %v1922
        %v2145 = vadd.f32 %v2144, %v1923
        %v2146 = vadd.f32 %v2145, %v1924
        %v2147 = vadd.f32 %v2146, %v1925
        %v2148 = vadd.f32 %v2147, %v1926
        %v2149 = vadd.f32 %v2148, %v1927
        %v2150 = vadd.f32 %v2149, %v1928
        %v2151 = vadd.f32 %v2150, %v1929
        %v2152 = vadd.f32 %v2151, %v1930
        %v2153 = vadd.f32 %v2152, %v1931
        %v2154 = vsel %vm659, %v1932, 0.0
        %v2155 = vadd.f32 %v2153, %v2154
        %v2156 = vadd.f32 %v2155, %v1933
        %v2157 = vadd.f32 %v2156, %v1934
        %v2158 = vadd.f32 %v2157, %v1935
        %v2159 = vadd.f32 %v2158, %v1936
        %v2160 = vadd.f32 %v2159, %v1937
        %v2161 = vadd.f32 %v2160, %v1938
        %v2162 = vadd.f32 %v2161, %v1939
        %v2163 = vadd.f32 %v2162, %v1940
        %v2164 = vadd.f32 %v2163, %v1941
        %v2165 = vadd.f32 %v2164, %v1942
        %v2166 = vadd.f32 %v2165, %v1943
        %v2167 = vsel %vm659, %v1944, 0.0
        %v2168 = vadd.f32 %v2166, %v2167
        %v2169 = vadd.f32 %v2168, %v1945
        %v2170 = vadd.f32 %v2169, %v1946
        %v2171 = vadd.f32 %v2170, %v1947
        %v2172 = vadd.f32 %v2171, %v1948
        %v2173 = vadd.f32 %v2172, %v1949
        %v2174 = vadd.f32 %v2173, %v1950
        %v2175 = vadd.f32 %v2174, %v1951
        %v2176 = vadd.f32 %v2175, %v1952
        %v2177 = vadd.f32 %v2176, %v1953
        %v2178 = vadd.f32 %v2177, %v1954
        %v2179 = vadd.f32 %v2178, %v1955
        %v2180 = vsel %vm659, %v1956, 0.0
        %v2181 = vadd.f32 %v2179, %v2180
        %v2182 = vadd.f32 %v2181, %v1957
        %v2183 = vadd.f32 %v2182, %v1958
        %v2184 = vadd.f32 %v2183, %v1959
        %v2185 = vadd.f32 %v2184, %v1960
        %v2186 = vadd.f32 %v2185, %v1961
        %v2187 = vadd.f32 %v2186, %v1962
        %v2188 = vadd.f32 %v2187, %v1963
        %v2189 = vadd.f32 %v2188, %v1964
        %v2190 = vadd.f32 %v2189, %v1965
        %v2191 = vadd.f32 %v2190, %v1966
        %v2192 = vadd.f32 %v2191, %v1967
        %v2193 = vsel %vm659, %v1968, 0.0
        %v2194 = vadd.f32 %v2192, %v2193
        %v2195 = vadd.f32 %v2194, %v1969
        %v2196 = vadd.f32 %v2195, %v1970
        %v2197 = vadd.f32 %v2196, %v1971
        %v2198 = vadd.f32 %v2197, %v1972
        %v2199 = vadd.f32 %v2198, %v1973
        %v2200 = vadd.f32 %v2199, %v1974
        %v2201 = vadd.f32 %v2200, %v1975
        %v2202 = vadd.f32 %v2201, %v1976
        %v2203 = vadd.f32 %v2202, %v1977
        %v2204 = vadd.f32 %v2203, %v1978
        %v2205 = vadd.f32 %v2204, %v1979
        %v2206 = vsel %vm659, %v1980, 0.0
        %v2207 = vadd.f32 %v2205, %v2206
        %v2208 = vadd.f32 %v2207, %v1981
        %v2209 = vadd.f32 %v2208, %v1982
        %v2210 = vadd.f32 %v2209, %v1983
        %v2211 = vadd.f32 %v2210, %v1984
        %v2212 = vadd.f32 %v2211, %v1985
        %v2213 = vadd.f32 %v2212, %v1986
        %v2214 = vadd.f32 %v2213, %v1987
        %v2215 = vadd.f32 %v2214, %v1988
        %v2216 = vadd.f32 %v2215, %v1989
        %v2217 = vadd.f32 %v2216, %v1990
        %v2218 = vadd.f32 %v2217, %v1991
        %v2219 = vsel %vm659, %v1992, 0.0
        %v2220 = vadd.f32 %v2218, %v2219
        %v2221 = vadd.f32 %v2220, %v1993
        %v2222 = vadd.f32 %v2221, %v1994
        %v2223 = vadd.f32 %v2222, %v1995
        %v2224 = vadd.f32 %v2223, %v1996
        %v2225 = vadd.f32 %v2224, %v1997
        %v2226 = vadd.f32 %v2225, %v1998
        %v2227 = vadd.f32 %v2226, %v1999
        %v2228 = vadd.f32 %v2227, %v2000
        %v2229 = vadd.f32 %v2228, %v2001
        %v2230 = vadd.f32 %v2229, %v2002
        %v2231 = vadd.f32 %v2230, %v2003
        %v2232 = vsel %vm659, %v2004, 0.0
        %v2233 = vadd.f32 %v2231, %v2232
        %v2234 = vadd.f32 %v2233, %v2005
        %v2235 = vadd.f32 %v2234, %v2006
        %v2236 = vadd.f32 %v2235, %v2007
        %v2237 = vadd.f32 %v2236, %v2008
        %v2238 = vadd.f32 %v2237, %v2009
        %v2239 = vadd.f32 %v2238, %v2010
        %v2240 = vadd.f32 %v2239, %v2011
        %v2241 = vadd.f32 %v2240, %v2012
        %v2242 = vadd.f32 %v2241, %v2013
        %v2243 = vadd.f32 %v2242, %v2014
        %v2244 = vadd.f32 %v2243, %v2015
        %v2245 = vsel %vm659, %v2016, 0.0
        %v2246 = vadd.f32 %v2244, %v2245
        %v2247 = vadd.f32 %v2246, %v2017
        %v2248 = vadd.f32 %v2247, %v2018
        %v2249 = vadd.f32 %v2248, %v2019
        %v2250 = vadd.f32 %v2249, %v2020
        %v2251 = vadd.f32 %v2250, %v2021
        %v2252 = vadd.f32 %v2251, %v2022
        %v2253 = vadd.f32 %v2252, %v2023
        %v2254 = vadd.f32 %v2253, %v2024
        %v2255 = vadd.f32 %v2254, %v2025
        %v2256 = vadd.f32 %v2255, %v2026
        %v2257 = vadd.f32 %v2256, %v2027
        %v2258 = vsel %vm659, %v2028, 0.0
        %v2259 = vadd.f32 %v2257, %v2258
        %v2260 = vadd.f32 %v2259, %v2029
        %v2261 = vadd.f32 %v2260, %v2030
        %v2262 = vadd.f32 %v2261, %v2031
        %v2263 = vadd.f32 %v2262, %v2032
        %v2264 = vadd.f32 %v2263, %v2033
        %v2265 = vadd.f32 %v2264, %v2034
        %v2266 = vadd.f32 %v2265, %v2035
        %v2267 = vadd.f32 %v2266, %v2036
        %v2268 = vadd.f32 %v2267, %v2037
        %v2269 = vadd.f32 %v2268, %v2038
        %v2270 = vadd.f32 %v2269, %v2039
        %v2271 = vsel %vm659, %v2040, 0.0
        %v2272 = vadd.f32 %v2270, %v2271
        %v2273 = vadd.f32 %v2272, %v2041
        %v2274 = vadd.f32 %v2273, %v2042
        %v2275 = vadd.f32 %v2274, %v2043
        %v2276 = vadd.f32 %v2275, %v2044
        %v2277 = vadd.f32 %v2276, %v2045
        %v2278 = vadd.f32 %v2277, %v2046
        %v2279 = vadd.f32 %v2278, %v2047
        %v2280 = vadd.f32 %v2279, %v2048
        %v2281 = vadd.f32 %v2280, %v2049
        %v2282 = vadd.f32 %v2281, %v2050
        %v2283 = vadd.f32 %v2282, %v2051
        %v2284 = vsel %vm659, %v2052, 0.0
        %v2285 = vadd.f32 %v2283, %v2284
        %2286 = vadd.xlane.f32.xlu0 %v2285
        %v2287 = vpop.xlane.xlu0 %2286
        %v2288 = vrot.slane %v2287, 4
        %v2289 = vadd.f32 %v2287, %v2288
        %v2290 = vrot.slane %v2289, 2
        %v2291 = vadd.f32 %v2289, %v2290
        %v2292 = vrot.slane %v2291, 1
        %v2293 = vadd.f32 %v2291, %v2292
        %s2294 = vtos %v2293
        %v2295 = vstv %s2294
        %v2296 = vadd.f32 %v1836, %v2295
        %2297 = vst [vmem:[#allocation4] sm:$0xff] %v2296
        // Predicated region
        $region29: #{threhook_layer_pallas.1} parent=23 // pred_check
          %p2298 = pneg %p1337
        $region30: #{threhook_layer_pallas.1} parent=23 // pred_check_branch
          %2300 = sbr.rel (%p2298) target = $region32
        $region31: #{threhook_layer_pallas.1} parent=23 // pred_region
          %v2301 = vld [vmem:[#allocation2] sm:$0xff]
          %2302 = vmax.xlane.f32.xlu0 %v2301
          %v2303 = vpop.xlane.xlu0 %2302
          %v2304 = vrot.slane %v2303, 4
          %v2305 = vmax.f32 %v2303, %v2304
          %v2306 = vrot.slane %v2305, 2
          %v2307 = vmax.f32 %v2305, %v2306
          %v2308 = vrot.slane %v2307, 1
          %v2309 = vmax.f32 %v2307, %v2308
          %s2310 = vtos %v2309
          %v2311 = vld [vmem:[#allocation3] sm:$0xff]
          %2312 = vmax.xlane.f32.xlu0 %v2311
          %v2313 = vpop.xlane.xlu0 %2312
          %v2314 = vrot.slane %v2313, 4
          %v2315 = vmax.f32 %v2313, %v2314
          %v2316 = vrot.slane %v2315, 2
          %v2317 = vmax.f32 %v2315, %v2316
          %v2318 = vrot.slane %v2317, 1
          %v2319 = vmax.f32 %v2317, %v2318
          %s2320 = vtos %v2319
          %v2321 = vld [vmem:[#allocation4] sm:$0xff]
          %2322 = vmax.xlane.f32.xlu0 %v2321
          %v2323 = vpop.xlane.xlu0 %2322
          %v2324 = vrot.slane %v2323, 4
          %v2325 = vmax.f32 %v2323, %v2324
          %v2326 = vrot.slane %v2325, 2
          %v2327 = vmax.f32 %v2325, %v2326
          %v2328 = vrot.slane %v2327, 1
          %v2329 = vmax.f32 %v2327, %v2328
          %s2330 = vtos %v2329
          %vm2331 = vcmp.eq.s32.totalorder %v866, 0
          %vm2332 = vcmp.eq.s32.totalorder %v866, 1
          %vm2333 = vcmp.eq.s32.totalorder %v866, 2
          %v2334 = vstv %s2330
          %v2335 = vsel %vm2333, %v2334, 0.0
          %v2336 = vstv %s2320
          %v2337 = vsel %vm2332, %v2336, %v2335
          %v2338 = vstv %s2310
          %v2339 = vsel %vm2331, %v2338, %v2337
          %2340 = vst [vmem:[%s215] sm:$0xff] %v2339
        $region32: #{threhook_layer_pallas.1} parent=23 // pred_fallthru
          _
        %s2341 = sand.u32 %s64, 1
        %s2342 = sand.u32 %s64, 1
        %s2343 = smul.addr %s2342, 1728
        %s2344 = scalar_lea.vmem [#allocation5], %s2343
        %p2345 = scmp.lt.s32.totalorder %s18, 1
        %s2346 = scalar_select %p2345, %s18, 1
        %s2347 = smul.addr %s2346, 8
        %s2348 = scalar_lea.vmem %s2, %s2347
        // Predicated region
        $region33: #{threhook_layer_pallas.1} parent=23 // pred_check
          %p2349 = pneg %p74
        $region34: #{threhook_layer_pallas.1} parent=23 // pred_check_branch
          %2351 = sbr.rel (%p2349) target = $region36
        $region35: #{threhook_layer_pallas.1} parent=23 // pred_region
          %s2352 = smul.u32 18, %s18
          %s2353 = smul.u32 12, %s19
          %s2354 = ssub.s32 35, %s2352
          %p2355 = scmp.lt.s32.totalorder %s2354, 18
          %s2356 = scalar_select %p2355, %s2354, 18
          %s2357 = smul.u32 8, %s2356
          %s2358 = smul.u32 %s2357, 12
          %p2359 = scmp.ne.s32.totalorder 0, %s2358
          %s2360 = smul.addr %s2352, 12
          %s2361 = sadd.s32 %s2353, %s2360
          %s2362 = smul.addr %s2361, 8
          %s2363 = scalar_lea.vmem %s1, %s2362
          // Predicated region
          $region37: #{threhook_layer_pallas.1} parent=35 // pred_check
            %p2364 = pneg %p2359
          $region38: #{threhook_layer_pallas.1} parent=35 // pred_check_branch
            %2366 = sbr.rel (%p2364) target = $region40
          $region39: #{threhook_layer_pallas.1} parent=35 // pred_region
            // Predicated region
            $region41: #{threhook_layer_pallas.1} parent=39 // pred_check
              _
            $region42: #{threhook_layer_pallas.1} parent=39 // pred_check_branch
              %2368 = sbr.rel (0) target = $region44
            $region43: #{threhook_layer_pallas.1} parent=39 // pred_region
              %s2369 = sdiv.u32.pop %s2356, 3
              %s2370 = srem.u32.pop %s2356, 3
              // While loop
              $region45: #{threhook_layer_pallas.1} parent=43 // loop_pre_header
                _
              $region46: #{threhook_layer_pallas.1} parent=43 // loop_header
                %s2372 = sphi 0, %s2374
                %p2373 = scmp.ge.s32.totalorder %s2372, %s2369
                %s2377 = sphi 0, %s2454
                %s2378 = sphi %s2344, %s2457
                %s2379 = sphi %s2363, %s2458
              $region47: #{threhook_layer_pallas.1} parent=43 // loop_header_branch
                %2376 = sbr.rel (%p2373) target = $region51
              $region48: #{threhook_layer_pallas.1} parent=43 // loop_body
                %v2380 = vld [vmem:[%s2378] sm:$0xff]
                %2381 = vst [vmem:[%s2379] sm:$0xff] %v2380
                %v2382 = vld [vmem:[%s2378 + $0x60] sm:$0xff]
                %2383 = vst [vmem:[%s2379 + $0x60] sm:$0xff] %v2382
                %v2384 = vld [vmem:[%s2378 + $0xc0] sm:$0xff]
                %2385 = vst [vmem:[%s2379 + $0xc0] sm:$0xff] %v2384
                %v2386 = vld [vmem:[%s2378 + $0x8] sm:$0xff]
                %2387 = vst [vmem:[%s2379 + $0x8] sm:$0xff] %v2386
                %v2388 = vld [vmem:[%s2378 + $0x68] sm:$0xff]
                %2389 = vst [vmem:[%s2379 + $0x68] sm:$0xff] %v2388
                %v2390 = vld [vmem:[%s2378 + $0xc8] sm:$0xff]
                %2391 = vst [vmem:[%s2379 + $0xc8] sm:$0xff] %v2390
                %v2392 = vld [vmem:[%s2378 + $0x10] sm:$0xff]
                %2393 = vst [vmem:[%s2379 + $0x10] sm:$0xff] %v2392
                %v2394 = vld [vmem:[%s2378 + $0x70] sm:$0xff]
                %2395 = vst [vmem:[%s2379 + $0x70] sm:$0xff] %v2394
                %v2396 = vld [vmem:[%s2378 + $0xd0] sm:$0xff]
                %2397 = vst [vmem:[%s2379 + $0xd0] sm:$0xff] %v2396
                %v2398 = vld [vmem:[%s2378 + $0x18] sm:$0xff]
                %2399 = vst [vmem:[%s2379 + $0x18] sm:$0xff] %v2398
                %v2400 = vld [vmem:[%s2378 + $0x78] sm:$0xff]
                %2401 = vst [vmem:[%s2379 + $0x78] sm:$0xff] %v2400
                %v2402 = vld [vmem:[%s2378 + $0xd8] sm:$0xff]
                %2403 = vst [vmem:[%s2379 + $0xd8] sm:$0xff] %v2402
                %v2404 = vld [vmem:[%s2378 + $0x20] sm:$0xff]
                %2405 = vst [vmem:[%s2379 + $0x20] sm:$0xff] %v2404
                %v2406 = vld [vmem:[%s2378 + $0x80] sm:$0xff]
                %2407 = vst [vmem:[%s2379 + $0x80] sm:$0xff] %v2406
                %v2408 = vld [vmem:[%s2378 + $0xe0] sm:$0xff]
                %2409 = vst [vmem:[%s2379 + $0xe0] sm:$0xff] %v2408
                %v2410 = vld [vmem:[%s2378 + $0x28] sm:$0xff]
                %2411 = vst [vmem:[%s2379 + $0x28] sm:$0xff] %v2410
                %v2412 = vld [vmem:[%s2378 + $0x88] sm:$0xff]
                %2413 = vst [vmem:[%s2379 + $0x88] sm:$0xff] %v2412
                %v2414 = vld [vmem:[%s2378 + $0xe8] sm:$0xff]
                %2415 = vst [vmem:[%s2379 + $0xe8] sm:$0xff] %v2414
                %v2416 = vld [vmem:[%s2378 + $0x30] sm:$0xff]
                %2417 = vst [vmem:[%s2379 + $0x30] sm:$0xff] %v2416
                %v2418 = vld [vmem:[%s2378 + $0x90] sm:$0xff]
                %2419 = vst [vmem:[%s2379 + $0x90] sm:$0xff] %v2418
                %v2420 = vld [vmem:[%s2378 + $0xf0] sm:$0xff]
                %2421 = vst [vmem:[%s2379 + $0xf0] sm:$0xff] %v2420
                %v2422 = vld [vmem:[%s2378 + $0x38] sm:$0xff]
                %2423 = vst [vmem:[%s2379 + $0x38] sm:$0xff] %v2422
                %v2424 = vld [vmem:[%s2378 + $0x98] sm:$0xff]
                %2425 = vst [vmem:[%s2379 + $0x98] sm:$0xff] %v2424
                %v2426 = vld [vmem:[%s2378 + $0xf8] sm:$0xff]
                %2427 = vst [vmem:[%s2379 + $0xf8] sm:$0xff] %v2426
                %v2428 = vld [vmem:[%s2378 + $0x40] sm:$0xff]
                %2429 = vst [vmem:[%s2379 + $0x40] sm:$0xff] %v2428
                %v2430 = vld [vmem:[%s2378 + $0xa0] sm:$0xff]
                %2431 = vst [vmem:[%s2379 + $0xa0] sm:$0xff] %v2430
                %v2432 = vld [vmem:[%s2378 + $0x100] sm:$0xff]
                %2433 = vst [vmem:[%s2379 + $0x100] sm:$0xff] %v2432
                %v2434 = vld [vmem:[%s2378 + $0x48] sm:$0xff]
                %2435 = vst [vmem:[%s2379 + $0x48] sm:$0xff] %v2434
                %v2436 = vld [vmem:[%s2378 + $0xa8] sm:$0xff]
                %2437 = vst [vmem:[%s2379 + $0xa8] sm:$0xff] %v2436
                %v2438 = vld [vmem:[%s2378 + $0x108] sm:$0xff]
                %2439 = vst [vmem:[%s2379 + $0x108] sm:$0xff] %v2438
                %v2440 = vld [vmem:[%s2378 + $0x50] sm:$0xff]
                %2441 = vst [vmem:[%s2379 + $0x50] sm:$0xff] %v2440
                %v2442 = vld [vmem:[%s2378 + $0xb0] sm:$0xff]
                %2443 = vst [vmem:[%s2379 + $0xb0] sm:$0xff] %v2442
                %v2444 = vld [vmem:[%s2378 + $0x110] sm:$0xff]
                %2445 = vst [vmem:[%s2379 + $0x110] sm:$0xff] %v2444
                %v2446 = vld [vmem:[%s2378 + $0x58] sm:$0xff]
                %2447 = vst [vmem:[%s2379 + $0x58] sm:$0xff] %v2446
                %v2448 = vld [vmem:[%s2378 + $0xb8] sm:$0xff]
                %2449 = vst [vmem:[%s2379 + $0xb8] sm:$0xff] %v2448
                %v2450 = vld [vmem:[%s2378 + $0x118] sm:$0xff]
                %2451 = vst [vmem:[%s2379 + $0x118] sm:$0xff] %v2450
                %s2452 = sadd.s32 1, %s2377
                %p2453 = scmp.ge.s32.totalorder %s2452, %s2369
                %s2454 = scalar_select %p2453, 0, %s2452
                %s2455 = smul.u32 %s2454, 288
                %s2456 = smul.u32 %s2454, 288
                %s2457 = scalar_lea.vmem %s2344, %s2455 [#allocation5]
                %s2458 = scalar_lea.vmem %s2363, %s2456
              $region49: #{threhook_layer_pallas.1} parent=43 // loop_footer
                %s2374 = sadd.s32 %s2372, 1
              $region50: #{threhook_layer_pallas.1} parent=43 // loop_footer_branch
                %2371 = sbr.rel target = $region46
              $region51: #{threhook_layer_pallas.1} parent=43 // loop_exit
                _
              %s2459 = sdiv.u32.pop %s2356, 3
              %s2460 = srem.u32.pop %s2356, 3
              %s2461 = smul.u32 %s2459, 3
              %s2462 = smul.u32 96, %s2461
              %s2463 = scalar_lea.vmem %s2344, %s2462 [#allocation5]
              %s2464 = smul.u32 96, %s2461
              %s2465 = scalar_lea.vmem %s2363, %s2464
              // While loop
              $region52: #{threhook_layer_pallas.1} parent=43 // loop_pre_header
                _
              $region53: #{threhook_layer_pallas.1} parent=43 // loop_header
                %s2467 = sphi 0, %s2469
                %p2468 = scmp.ge.s32.totalorder %s2467, %s2460
                %s2472 = sphi 0, %s2501
                %s2473 = sphi %s2463, %s2504
                %s2474 = sphi %s2465, %s2505
              $region54: #{threhook_layer_pallas.1} parent=43 // loop_header_branch
                %2471 = sbr.rel (%p2468) target = $region58
              $region55: #{threhook_layer_pallas.1} parent=43 // loop_body
                %v2475 = vld [vmem:[%s2473] sm:$0xff]
                %2476 = vst [vmem:[%s2474] sm:$0xff] %v2475
                %v2477 = vld [vmem:[%s2473 + $0x8] sm:$0xff]
                %2478 = vst [vmem:[%s2474 + $0x8] sm:$0xff] %v2477
                %v2479 = vld [vmem:[%s2473 + $0x10] sm:$0xff]
                %2480 = vst [vmem:[%s2474 + $0x10] sm:$0xff] %v2479
                %v2481 = vld [vmem:[%s2473 + $0x18] sm:$0xff]
                %2482 = vst [vmem:[%s2474 + $0x18] sm:$0xff] %v2481
                %v2483 = vld [vmem:[%s2473 + $0x20] sm:$0xff]
                %2484 = vst [vmem:[%s2474 + $0x20] sm:$0xff] %v2483
                %v2485 = vld [vmem:[%s2473 + $0x28] sm:$0xff]
                %2486 = vst [vmem:[%s2474 + $0x28] sm:$0xff] %v2485
                %v2487 = vld [vmem:[%s2473 + $0x30] sm:$0xff]
                %2488 = vst [vmem:[%s2474 + $0x30] sm:$0xff] %v2487
                %v2489 = vld [vmem:[%s2473 + $0x38] sm:$0xff]
                %2490 = vst [vmem:[%s2474 + $0x38] sm:$0xff] %v2489
                %v2491 = vld [vmem:[%s2473 + $0x40] sm:$0xff]
                %2492 = vst [vmem:[%s2474 + $0x40] sm:$0xff] %v2491
                %v2493 = vld [vmem:[%s2473 + $0x48] sm:$0xff]
                %2494 = vst [vmem:[%s2474 + $0x48] sm:$0xff] %v2493
                %v2495 = vld [vmem:[%s2473 + $0x50] sm:$0xff]
                %2496 = vst [vmem:[%s2474 + $0x50] sm:$0xff] %v2495
                %v2497 = vld [vmem:[%s2473 + $0x58] sm:$0xff]
                %2498 = vst [vmem:[%s2474 + $0x58] sm:$0xff] %v2497
                %s2499 = sadd.s32 1, %s2472
                %p2500 = scmp.ge.s32.totalorder %s2499, %s2460
                %s2501 = scalar_select %p2500, 0, %s2499
                %s2502 = smul.u32 %s2501, 96
                %s2503 = smul.u32 %s2501, 96
                %s2504 = scalar_lea.vmem %s2463, %s2502 [#allocation5]
                %s2505 = scalar_lea.vmem %s2465, %s2503
              $region56: #{threhook_layer_pallas.1} parent=43 // loop_footer
                %s2469 = sadd.s32 %s2467, 1
              $region57: #{threhook_layer_pallas.1} parent=43 // loop_footer_branch
                %2466 = sbr.rel target = $region53
              $region58: #{threhook_layer_pallas.1} parent=43 // loop_exit
                _
            $region44: #{threhook_layer_pallas.1} parent=39 // pred_fallthru
              _
            // Predicated region
            $region59: #{threhook_layer_pallas.1} parent=39 // pred_check
              _
            $region60: #{threhook_layer_pallas.1} parent=39 // pred_check_branch
              %2507 = sbr.rel target = $region62
            $region61: #{threhook_layer_pallas.1} parent=39 // pred_region
              _
            $region62: #{threhook_layer_pallas.1} parent=39 // pred_fallthru
              _
          $region40: #{threhook_layer_pallas.1} parent=35 // pred_fallthru
            _
          %2508 = vnop
        $region36: #{threhook_layer_pallas.1} parent=23 // pred_fallthru
          _
        // Predicated region
        $region63: #{threhook_layer_pallas.1} parent=23 // pred_check
          %p2509 = pneg %p100
        $region64: #{threhook_layer_pallas.1} parent=23 // pred_check_branch
          %2511 = sbr.rel (%p2509) target = $region66
        $region65: #{threhook_layer_pallas.1} parent=23 // pred_region
          _
        $region66: #{threhook_layer_pallas.1} parent=23 // pred_fallthru
          _
      $region24: #{threhook_layer_pallas.1} parent=5 // pred_fallthru
        _
      %p2512 = scmp.le.s32.totalorder 2, %s9
      // Predicated region
      $region67: #{threhook_layer_pallas.1} parent=5 // pred_check
        %p2513 = pneg %p2512
      $region68: #{threhook_layer_pallas.1} parent=5 // pred_check_branch
        %2515 = sbr.rel (%p2513) target = $region70
      $region69: #{threhook_layer_pallas.1} parent=5 // pred_region
        %s2516 = ssub.s32 %s9, 2
        // Predicated region
        $region71: #{threhook_layer_pallas.1} parent=69 // pred_check
          %p2517 = pneg %p80
        $region72: #{threhook_layer_pallas.1} parent=69 // pred_check_branch
          %2519 = sbr.rel (%p2517) target = $region74
        $region73: #{threhook_layer_pallas.1} parent=69 // pred_region
          %s2520 = sand.u32 %s65, 1
          %s2521 = sand.u32 %s65, 1
          %s2522 = smul.addr %s2521, 1728
          %s2523 = scalar_lea.vmem [#allocation5], %s2522
        $region74: #{threhook_layer_pallas.1} parent=69 // pred_fallthru
          _
        // Predicated region
        $region75: #{threhook_layer_pallas.1} parent=69 // pred_check
          %p2524 = pneg %p106
        $region76: #{threhook_layer_pallas.1} parent=69 // pred_check_branch
          %2526 = sbr.rel (%p2524) target = $region78
        $region77: #{threhook_layer_pallas.1} parent=69 // pred_region
          %p2527 = scmp.lt.s32.totalorder %s20, 1
          %s2528 = scalar_select %p2527, %s20, 1
          %s2529 = smul.addr %s2528, 8
          %s2530 = scalar_lea.vmem %s2, %s2529
        $region78: #{threhook_layer_pallas.1} parent=69 // pred_fallthru
          _
      $region70: #{threhook_layer_pallas.1} parent=5 // pred_fallthru
        _
    $region6: #{threhook_layer_pallas.1} parent=1 // loop_footer
      %s13 = sadd.s32 1, %s9
    $region7: #{threhook_layer_pallas.1} parent=1 // loop_footer_branch
      %8 = sbr.rel target = $region3
    $region8: #{threhook_layer_pallas.1} parent=1 // loop_exit
      _

</llo_original>
